<compile_context>
chip_gen: v7x
topology: tpu7x:2x2x1
jax: 0.10.0
libtpu: 0.0.40
codegen_flags: <defaults>
</compile_context>

<pallas_src>
import functools

import jax
import jax.numpy as jnp
from jax.experimental import pallas as pl
from jax.experimental.pallas import tpu as pltpu


def _mlp_kernel(x_ref, w1_ref, b1_ref, w2_ref, b2_ref, w3_ref, b3_ref,
                w4_ref, b4_ref, out_ref):
    """Fused 4-layer MLP forward over one (3, block_m) batch tile.

    x_ref  : (3, bm)   compute dtype      w1_ref : (64, 3)    b1_ref : (64, 1)  f32
    w2_ref : (128, 64)                    b2_ref : (128, 1) f32
    w3_ref : (64, 128)                    b3_ref : (64, 1)  f32
    w4_ref : (1, 64)                      b4_ref : (1, 1)   f32
    out_ref: (1, bm)   f32
    """
    # ---- layer 1 (3 -> 64) on the VPU: a K=3 MXU pass would waste >97% of the
    # contraction rows, so use 3 broadcast FMAs in f32 instead. -----------------
    x = x_ref[...].astype(jnp.float32)        # (3, bm)
    w1 = w1_ref[...].astype(jnp.float32)      # (64, 3)
    h = (w1[:, 0:1] * x[0:1, :]
         + w1[:, 1:2] * x[1:2, :]
         + w1[:, 2:3] * x[2:3, :]
         + b1_ref[...])                       # (64, bm) f32
    h = jnp.maximum(h, 0.0)

    # ---- layer 2 (64 -> 128) on the MXU, batch streams along lanes. ----------
    h = jnp.dot(w2_ref[...], h.astype(w2_ref.dtype),
                preferred_element_type=jnp.float32) + b2_ref[...]
    h = jnp.maximum(h, 0.0)

    # ---- layer 3 (128 -> 64). ------------------------------------------------
    h = jnp.dot(w3_ref[...], h.astype(w3_ref.dtype),
                preferred_element_type=jnp.float32) + b3_ref[...]
    h = jnp.maximum(h, 0.0)

    # ---- layer 4 (64 -> 1). ----------------------------------------------------
    out = jnp.dot(w4_ref[...], h.astype(w4_ref.dtype),
                  preferred_element_type=jnp.float32) + b4_ref[...]
    out_ref[...] = out.astype(out_ref.dtype)  # (1, bm) lane-dense, unmasked store


@functools.partial(jax.jit, static_argnames=("block_m", "compute_dtype"))
def mlp_forward(x, params, block_m=1024, compute_dtype=jnp.float32):
    """Pallas MLP forward. x: (N, 3) or (N, 3, 1) float32. Returns (N,) float32."""
    # Mirror PyTorch `if x.shape[-1] == 1: x = x.squeeze()`, but only drop the
    # trailing singleton so a batch of 1 is never squeezed away.
    if x.ndim > 1 and x.shape[-1] == 1:
        x = jnp.squeeze(x, axis=-1)

    w1, b1, w2, b2, w3, b3, w4, b4 = params
    n, d_in = x.shape

    # Batch tile must be lane-aligned; round up to a multiple of 128.
    block_m = max(128, ((block_m + 127) // 128) * 128)
    n_blocks = pl.cdiv(n, block_m)
    n_pad = n_blocks * block_m

    # (N, 3) -> zero-padded, transposed (3, N_pad): batch is lane-dense end-to-end.
    xt = jnp.pad(x, ((0, n_pad - n), (0, 0))).T.astype(compute_dtype)

    cdt = compute_dtype
    full = lambda i: (0, 0)

    out = pl.pallas_call(
        _mlp_kernel,
        out_shape=jax.ShapeDtypeStruct((1, n_pad), jnp.float32),
        grid_spec=pltpu.PrefetchScalarGridSpec(
            num_scalar_prefetch=0,
            grid=(n_blocks,),
            in_specs=[
                pl.BlockSpec((d_in, block_m), lambda i: (0, i)),  # x tile (3, bm)
                pl.BlockSpec(w1.shape, full),   # W1 (64, 3)
                pl.BlockSpec(b1.shape, full),   # b1 (64, 1)
                pl.BlockSpec(w2.shape, full),   # W2 (128, 64)
                pl.BlockSpec(b2.shape, full),   # b2 (128, 1)
                pl.BlockSpec(w3.shape, full),   # W3 (64, 128)
                pl.BlockSpec(b3.shape, full),   # b3 (64, 1)
                pl.BlockSpec(w4.shape, full),   # W4 (1, 64)
                pl.BlockSpec(b4.shape, full),   # b4 (1, 1)
            ],
            out_specs=pl.BlockSpec((1, block_m), lambda i: (0, i)),
        ),
        compiler_params=pltpu.CompilerParams(
            # Independent batch tiles -> shard grid steps across v7x's 2 TCs.
            dimension_semantics=("parallel",)),
    )(xt, w1.astype(cdt), b1, w2.astype(cdt), b2,
      w3.astype(cdt), b3, w4.astype(cdt), b4)

    # (1, N_pad) -> (N,): drop padding, then the module's final .squeeze().
    return out[0, :n]


def init_params(key):
    """Deterministic init mimicking nn.Linear default: U(-1/sqrt(in), 1/sqrt(in)).

    Weights stored (out_features, in_features), biases (out_features, 1),
    matching the transposed (feature, batch) kernel layout.
    """
    dims = [(3, 64), (64, 128), (128, 64), (64, 1)]
    params = []
    for (d_in, d_out) in dims:
        key, kw, kb = jax.random.split(key, 3)
        bound = 1.0 / (d_in ** 0.5)
        w = jax.random.uniform(kw, (d_out, d_in), jnp.float32, -bound, bound)
        b = jax.random.uniform(kb, (d_out, 1), jnp.float32, -bound, bound)
        params.extend([w, b])
    return tuple(params)


def mlp_reference(x, params):
    """Pure-JAX f32 reference for correctness checks."""
    if x.ndim > 1 and x.shape[-1] == 1:
        x = jnp.squeeze(x, axis=-1)
    w1, b1, w2, b2, w3, b3, w4, b4 = params
    h = jnp.maximum(x @ w1.T + b1.T, 0.0)
    h = jnp.maximum(h @ w2.T + b2.T, 0.0)
    h = jnp.maximum(h @ w3.T + b3.T, 0.0)
    return jnp.squeeze(h @ w4.T + b4.T, axis=-1)


if __name__ == "__main__":
    key = jax.random.PRNGKey(0)
    key, kx1, kx2 = jax.random.split(key, 3)
    params = init_params(key)

    # Small batch with trailing singleton dim (exercises the squeeze branch).
    x1 = jax.random.normal(kx1, (8, 3, 1), jnp.float32)
    out1 = jax.block_until_ready(mlp_forward(x1, params))
    ref1 = mlp_reference(x1, params)
    assert out1.shape == (8,), out1.shape
    assert jnp.allclose(out1, ref1, atol=1e-5, rtol=1e-4), (out1, ref1)

    # Batch not a multiple of block_m, multi-block grid (300 -> pad 384, grid=3).
    x2 = jax.random.normal(kx2, (300, 3), jnp.float32)
    out2 = jax.block_until_ready(mlp_forward(x2, params, block_m=128))
    ref2 = mlp_reference(x2, params)
    assert out2.shape == (300,), out2.shape
    assert jnp.allclose(out2, ref2, atol=1e-5, rtol=1e-4), (out2, ref2)

    # bf16 matmul operands (native MXU dtype on v6e/v7x), f32 accumulation.
    out3 = jax.block_until_ready(
        mlp_forward(x2, params, block_m=128, compute_dtype=jnp.bfloat16))
    assert out3.shape == (300,), out3.shape
    assert jnp.allclose(out3, ref2, atol=5e-2, rtol=5e-2), (out3, ref2)

    print("KERNEL_OK")
</pallas_src>

<mosaic_0001>
module attributes {stable_mosaic.version = 11 : i64} {
  func.func @_mlp_kernel(%arg0: i32, %arg1: memref<3x1024xf32, #tpu.memory_space<vmem>>, %arg2: memref<64x3xf32, #tpu.memory_space<vmem>>, %arg3: memref<64x1xf32, #tpu.memory_space<vmem>>, %arg4: memref<128x64xf32, #tpu.memory_space<vmem>>, %arg5: memref<128x1xf32, #tpu.memory_space<vmem>>, %arg6: memref<64x128xf32, #tpu.memory_space<vmem>>, %arg7: memref<64x1xf32, #tpu.memory_space<vmem>>, %arg8: memref<1x64xf32, #tpu.memory_space<vmem>>, %arg9: memref<1x1xf32, #tpu.memory_space<vmem>>, %arg10: memref<1x1024xf32, #tpu.memory_space<vmem>>) attributes {dimension_semantics = [#tpu.dimension_semantics<parallel>], iteration_bounds = array<i64: 1>, scalar_prefetch = 0 : i64, scratch_operands = 0 : i64, tpu.core_type = #tpu.core_type<tc>, window_params = [{transform_indices = @transform_0, window_bounds = array<i64: 3, 1024>}, {pipeline_mode = #tpu.pipeline_mode<synchronous>, transform_indices = @transform_1, window_bounds = array<i64: 64, 3>}, {pipeline_mode = #tpu.pipeline_mode<synchronous>, transform_indices = @transform_2, window_bounds = array<i64: 64, 1>}, {pipeline_mode = #tpu.pipeline_mode<synchronous>, transform_indices = @transform_3, window_bounds = array<i64: 128, 64>}, {pipeline_mode = #tpu.pipeline_mode<synchronous>, transform_indices = @transform_4, window_bounds = array<i64: 128, 1>}, {pipeline_mode = #tpu.pipeline_mode<synchronous>, transform_indices = @transform_5, window_bounds = array<i64: 64, 128>}, {pipeline_mode = #tpu.pipeline_mode<synchronous>, transform_indices = @transform_6, window_bounds = array<i64: 64, 1>}, {pipeline_mode = #tpu.pipeline_mode<synchronous>, transform_indices = @transform_7, window_bounds = array<i64: 1, 64>}, {pipeline_mode = #tpu.pipeline_mode<synchronous>, transform_indices = @transform_8, window_bounds = array<i64: 1, 1>}, {transform_indices = @transform_9, window_bounds = array<i64: 1, 1024>}]} {
    %c0 = arith.constant 0 : index
    %c0_0 = arith.constant 0 : index
    %0 = vector.load %arg1[%c0, %c0_0] : memref<3x1024xf32, #tpu.memory_space<vmem>>, vector<3x1024xf32>
    %c0_1 = arith.constant 0 : index
    %c0_2 = arith.constant 0 : index
    %1 = vector.load %arg2[%c0_1, %c0_2] : memref<64x3xf32, #tpu.memory_space<vmem>>, vector<64x3xf32>
    %2 = vector.extract_strided_slice %1 {offsets = [0, 0], sizes = [64, 1], strides = [1, 1]} : vector<64x3xf32> to vector<64x1xf32>
    %3 = vector.extract_strided_slice %0 {offsets = [0, 0], sizes = [1, 1024], strides = [1, 1]} : vector<3x1024xf32> to vector<1x1024xf32>
    %4 = vector.broadcast %2 : vector<64x1xf32> to vector<64x1024xf32>
    %5 = vector.broadcast %3 : vector<1x1024xf32> to vector<64x1024xf32>
    %6 = arith.mulf %4, %5 : vector<64x1024xf32>
    %7 = vector.extract_strided_slice %1 {offsets = [0, 1], sizes = [64, 1], strides = [1, 1]} : vector<64x3xf32> to vector<64x1xf32>
    %8 = vector.extract_strided_slice %0 {offsets = [1, 0], sizes = [1, 1024], strides = [1, 1]} : vector<3x1024xf32> to vector<1x1024xf32>
    %9 = vector.broadcast %7 : vector<64x1xf32> to vector<64x1024xf32>
    %10 = vector.broadcast %8 : vector<1x1024xf32> to vector<64x1024xf32>
    %11 = arith.mulf %9, %10 : vector<64x1024xf32>
    %12 = arith.addf %6, %11 : vector<64x1024xf32>
    %13 = vector.extract_strided_slice %1 {offsets = [0, 2], sizes = [64, 1], strides = [1, 1]} : vector<64x3xf32> to vector<64x1xf32>
    %14 = vector.extract_strided_slice %0 {offsets = [2, 0], sizes = [1, 1024], strides = [1, 1]} : vector<3x1024xf32> to vector<1x1024xf32>
    %15 = vector.broadcast %13 : vector<64x1xf32> to vector<64x1024xf32>
    %16 = vector.broadcast %14 : vector<1x1024xf32> to vector<64x1024xf32>
    %17 = arith.mulf %15, %16 : vector<64x1024xf32>
    %18 = arith.addf %12, %17 : vector<64x1024xf32>
    %c0_3 = arith.constant 0 : index
    %c0_4 = arith.constant 0 : index
    %19 = vector.load %arg3[%c0_3, %c0_4] : memref<64x1xf32, #tpu.memory_space<vmem>>, vector<64x1xf32>
    %20 = vector.broadcast %19 : vector<64x1xf32> to vector<64x1024xf32>
    %21 = arith.addf %18, %20 : vector<64x1024xf32>
    %cst = arith.constant 0.000000e+00 : f32
    %22 = vector.broadcast %cst : f32 to vector<64x1024xf32>
    %23 = arith.maximumf %21, %22 : vector<64x1024xf32>
    %c0_5 = arith.constant 0 : index
    %c0_6 = arith.constant 0 : index
    %24 = vector.load %arg4[%c0_5, %c0_6] : memref<128x64xf32, #tpu.memory_space<vmem>>, vector<128x64xf32>
    %cst_7 = arith.constant dense<0.000000e+00> : vector<128x1024xf32>
    %25 = tpu.matmul %24, %23, %cst_7 {dimension_numbers = #tpu.dot_dimension_numbers<[1], [0], [0], [1], [0, 0, 1, 1], [], []>} : vector<128x64xf32>, vector<64x1024xf32>, vector<128x1024xf32> -> vector<128x1024xf32>
    %c0_8 = arith.constant 0 : index
    %c0_9 = arith.constant 0 : index
    %26 = vector.load %arg5[%c0_8, %c0_9] : memref<128x1xf32, #tpu.memory_space<vmem>>, vector<128x1xf32>
    %27 = vector.broadcast %26 : vector<128x1xf32> to vector<128x1024xf32>
    %28 = arith.addf %25, %27 : vector<128x1024xf32>
    %cst_10 = arith.constant 0.000000e+00 : f32
    %29 = vector.broadcast %cst_10 : f32 to vector<128x1024xf32>
    %30 = arith.maximumf %28, %29 : vector<128x1024xf32>
    %c0_11 = arith.constant 0 : index
    %c0_12 = arith.constant 0 : index
    %31 = vector.load %arg6[%c0_11, %c0_12] : memref<64x128xf32, #tpu.memory_space<vmem>>, vector<64x128xf32>
    %cst_13 = arith.constant dense<0.000000e+00> : vector<64x1024xf32>
    %32 = tpu.matmul %31, %30, %cst_13 {dimension_numbers = #tpu.dot_dimension_numbers<[1], [0], [0], [1], [0, 0, 1, 1], [], []>} : vector<64x128xf32>, vector<128x1024xf32>, vector<64x1024xf32> -> vector<64x1024xf32>
    %c0_14 = arith.constant 0 : index
    %c0_15 = arith.constant 0 : index
    %33 = vector.load %arg7[%c0_14, %c0_15] : memref<64x1xf32, #tpu.memory_space<vmem>>, vector<64x1xf32>
    %34 = vector.broadcast %33 : vector<64x1xf32> to vector<64x1024xf32>
    %35 = arith.addf %32, %34 : vector<64x1024xf32>
    %cst_16 = arith.constant 0.000000e+00 : f32
    %36 = vector.broadcast %cst_16 : f32 to vector<64x1024xf32>
    %37 = arith.maximumf %35, %36 : vector<64x1024xf32>
    %c0_17 = arith.constant 0 : index
    %c0_18 = arith.constant 0 : index
    %38 = vector.load %arg8[%c0_17, %c0_18] : memref<1x64xf32, #tpu.memory_space<vmem>>, vector<1x64xf32>
    %cst_19 = arith.constant dense<0.000000e+00> : vector<1x1024xf32>
    %39 = tpu.matmul %38, %37, %cst_19 {dimension_numbers = #tpu.dot_dimension_numbers<[1], [0], [0], [1], [0, 0, 1, 1], [], []>} : vector<1x64xf32>, vector<64x1024xf32>, vector<1x1024xf32> -> vector<1x1024xf32>
    %c0_20 = arith.constant 0 : index
    %c0_21 = arith.constant 0 : index
    %40 = vector.load %arg9[%c0_20, %c0_21] : memref<1x1xf32, #tpu.memory_space<vmem>>, vector<1x1xf32>
    %41 = vector.broadcast %40 : vector<1x1xf32> to vector<1x1024xf32>
    %42 = arith.addf %39, %41 : vector<1x1024xf32>
    %c0_22 = arith.constant 0 : index
    %c0_23 = arith.constant 0 : index
    %43 = vector.load %arg10[%c0_22, %c0_23] : memref<1x1024xf32, #tpu.memory_space<vmem>>, vector<1x1024xf32>
    tpu.vector_store %arg10[%c0_22, %c0_23], %42 {strides = array<i32>} : memref<1x1024xf32, #tpu.memory_space<vmem>>, vector<1x1024xf32>,
    return
  }
  func.func @transform_0(%arg0: i32) -> (i32, i32) {
    %c0_i32 = arith.constant 0 : i32
    %c0_i32_0 = arith.constant 0 : i32
    return %c0_i32, %arg0 : i32, i32
  }
  func.func @transform_1(%arg0: i32) -> (i32, i32) {
    %c0_i32 = arith.constant 0 : i32
    %c0_i32_0 = arith.constant 0 : i32
    %c0_i32_1 = arith.constant 0 : i32
    return %c0_i32, %c0_i32_0 : i32, i32
  }
  func.func @transform_2(%arg0: i32) -> (i32, i32) {
    %c0_i32 = arith.constant 0 : i32
    %c0_i32_0 = arith.constant 0 : i32
    %c0_i32_1 = arith.constant 0 : i32
    return %c0_i32, %c0_i32_0 : i32, i32
  }
  func.func @transform_3(%arg0: i32) -> (i32, i32) {
    %c0_i32 = arith.constant 0 : i32
    %c0_i32_0 = arith.constant 0 : i32
    %c0_i32_1 = arith.constant 0 : i32
    return %c0_i32, %c0_i32_0 : i32, i32
  }
  func.func @transform_4(%arg0: i32) -> (i32, i32) {
    %c0_i32 = arith.constant 0 : i32
    %c0_i32_0 = arith.constant 0 : i32
    %c0_i32_1 = arith.constant 0 : i32
    return %c0_i32, %c0_i32_0 : i32, i32
  }
  func.func @transform_5(%arg0: i32) -> (i32, i32) {
    %c0_i32 = arith.constant 0 : i32
    %c0_i32_0 = arith.constant 0 : i32
    %c0_i32_1 = arith.constant 0 : i32
    return %c0_i32, %c0_i32_0 : i32, i32
  }
  func.func @transform_6(%arg0: i32) -> (i32, i32) {
    %c0_i32 = arith.constant 0 : i32
    %c0_i32_0 = arith.constant 0 : i32
    %c0_i32_1 = arith.constant 0 : i32
    return %c0_i32, %c0_i32_0 : i32, i32
  }
  func.func @transform_7(%arg0: i32) -> (i32, i32) {
    %c0_i32 = arith.constant 0 : i32
    %c0_i32_0 = arith.constant 0 : i32
    %c0_i32_1 = arith.constant 0 : i32
    return %c0_i32, %c0_i32_0 : i32, i32
  }
  func.func @transform_8(%arg0: i32) -> (i32, i32) {
    %c0_i32 = arith.constant 0 : i32
    %c0_i32_0 = arith.constant 0 : i32
    %c0_i32_1 = arith.constant 0 : i32
    return %c0_i32, %c0_i32_0 : i32, i32
  }
  func.func @transform_9(%arg0: i32) -> (i32, i32) {
    %c0_i32 = arith.constant 0 : i32
    %c0_i32_0 = arith.constant 0 : i32
    return %c0_i32, %arg0 : i32, i32
  }
}

</mosaic_0001>

<llo_original>
// kernel: mlp_forward.1
$region0: #{mlp_forward.1}
  #allocation0 [shape = 'u32[]', space=smem, size = 0x4, offset = 0x4, fixed_abs, tag = 'smem constant byte address 0x4 - core index']
  #allocation1 [shape = 'u32[144,128]{1,0:T(1,128)}', space=vmem, size = 0x12000, scoped, tag = 'internal scratch']
  #allocation2 [shape = 'f32[1,1]{1,0:T(1,128)S(1)}', space=vmem, size = 0x200, scoped, tag = 'scoped memory for mlp_forward.1']
  %s0 = inlined_call_operand.vmem [shape: f32[3,1024], index: 0, kind: input, shape index: {}]
  %s1 = inlined_call_operand.vmem [shape: f32[64,3], index: 1, kind: input, shape index: {}]
  %s2 = inlined_call_operand.vmem [shape: f32[64,1], index: 2, kind: input, shape index: {}]
  %s3 = inlined_call_operand.vmem [shape: f32[128,64], index: 3, kind: input, shape index: {}]
  %s4 = inlined_call_operand.vmem [shape: f32[128,1], index: 4, kind: input, shape index: {}]
  %s5 = inlined_call_operand.vmem [shape: f32[64,128], index: 5, kind: input, shape index: {}]
  %s6 = inlined_call_operand.vmem [shape: f32[64,1], index: 6, kind: input, shape index: {}]
  %s7 = inlined_call_operand.vmem [shape: f32[1,64], index: 7, kind: input, shape index: {}]
  %s8 = inlined_call_operand.<no memory space> [shape: f32[1,1], index: 8, kind: input, shape index: {}]
  %s9 = inlined_call_operand.vmem [shape: f32[1,1024], index: 9, kind: output, shape index: {}]
  %s10 = sld [smem:[#allocation0]]
  $region46: #{mlp_forward.1} parent=0
    _
  %s12 = ssub.s32 1, %s10
  %s13 = scalar_select 0, %s12, %s10
  %v14 = vstv %s8
  %15 = vst [vmem:[#allocation2] sm:$0x1] %v14
  // Predicated region
  $region2: #{mlp_forward.1} parent=0 // pred_check
    _
  $region3: #{mlp_forward.1} parent=0 // pred_check_branch
    %17 = sbr.rel (0) target = $region5
  $region4: #{mlp_forward.1} parent=0 // pred_region
    _
  $region5: #{mlp_forward.1} parent=0 // pred_fallthru
    _
  // Predicated region
  $region6: #{mlp_forward.1} parent=0 // pred_check
    _
  $region7: #{mlp_forward.1} parent=0 // pred_check_branch
    %19 = sbr.rel (0) target = $region9
  $region8: #{mlp_forward.1} parent=0 // pred_region
    _
  $region9: #{mlp_forward.1} parent=0 // pred_fallthru
    _
  // Predicated region
  $region10: #{mlp_forward.1} parent=0 // pred_check
    _
  $region11: #{mlp_forward.1} parent=0 // pred_check_branch
    %21 = sbr.rel (0) target = $region13
  $region12: #{mlp_forward.1} parent=0 // pred_region
    _
  $region13: #{mlp_forward.1} parent=0 // pred_fallthru
    _
  // Predicated region
  $region14: #{mlp_forward.1} parent=0 // pred_check
    _
  $region15: #{mlp_forward.1} parent=0 // pred_check_branch
    %23 = sbr.rel (0) target = $region17
  $region16: #{mlp_forward.1} parent=0 // pred_region
    _
  $region17: #{mlp_forward.1} parent=0 // pred_fallthru
    _
  // Predicated region
  $region18: #{mlp_forward.1} parent=0 // pred_check
    _
  $region19: #{mlp_forward.1} parent=0 // pred_check_branch
    %25 = sbr.rel (0) target = $region21
  $region20: #{mlp_forward.1} parent=0 // pred_region
    _
  $region21: #{mlp_forward.1} parent=0 // pred_fallthru
    _
  // Predicated region
  $region22: #{mlp_forward.1} parent=0 // pred_check
    _
  $region23: #{mlp_forward.1} parent=0 // pred_check_branch
    %27 = sbr.rel (0) target = $region25
  $region24: #{mlp_forward.1} parent=0 // pred_region
    _
  $region25: #{mlp_forward.1} parent=0 // pred_fallthru
    _
  // Predicated region
  $region26: #{mlp_forward.1} parent=0 // pred_check
    _
  $region27: #{mlp_forward.1} parent=0 // pred_check_branch
    %29 = sbr.rel (0) target = $region29
  $region28: #{mlp_forward.1} parent=0 // pred_region
    _
  $region29: #{mlp_forward.1} parent=0 // pred_fallthru
    _
  // Predicated region
  $region30: #{mlp_forward.1} parent=0 // pred_check
    _
  $region31: #{mlp_forward.1} parent=0 // pred_check_branch
    %31 = sbr.rel (0) target = $region33
  $region32: #{mlp_forward.1} parent=0 // pred_region
    _
  $region33: #{mlp_forward.1} parent=0 // pred_fallthru
    _
  // Predicated region
  $region34: #{mlp_forward.1} parent=0 // pred_check
    _
  $region35: #{mlp_forward.1} parent=0 // pred_check_branch
    %33 = sbr.rel (0) target = $region37
  $region36: #{mlp_forward.1} parent=0 // pred_region
    _
  $region37: #{mlp_forward.1} parent=0 // pred_fallthru
    _
  %v34 = vld [vmem:[%s0] sm:$0x77]
  %v35 = vld [vmem:[%s0 + $0x8] sm:$0x77]
  %v36 = vld [vmem:[%s0 + $0x10] sm:$0x77]
  %v37 = vld [vmem:[%s0 + $0x18] sm:$0x77]
  %v38 = vld [vmem:[%s1] sm:$0xff]
  %v39 = vld [vmem:[%s1 + $0x8] sm:$0xff]
  %v40 = vld [vmem:[%s1 + $0x10] sm:$0xff]
  %v41 = vld [vmem:[%s1 + $0x18] sm:$0xff]
  %v42 = vld [vmem:[%s1 + $0x20] sm:$0xff]
  %v43 = vld [vmem:[%s1 + $0x28] sm:$0xff]
  %v44 = vld [vmem:[%s1 + $0x30] sm:$0xff]
  %v45 = vld [vmem:[%s1 + $0x38] sm:$0xff]
  %47 = vset.pattern.permute.xlu0 0
  %48 = vperm.xlu0 %47, %v38
  %v49 = vpop.permute.xlu0 %48
  %52 = vset.pattern.permute.xlu0 0
  %53 = vperm.xlu0 %52, %v39
  %v54 = vpop.permute.xlu0 %53
  %57 = vset.pattern.permute.xlu0 0
  %58 = vperm.xlu0 %57, %v40
  %v59 = vpop.permute.xlu0 %58
  %62 = vset.pattern.permute.xlu0 0
  %63 = vperm.xlu0 %62, %v41
  %v64 = vpop.permute.xlu0 %63
  %67 = vset.pattern.permute.xlu0 0
  %68 = vperm.xlu0 %67, %v42
  %v69 = vpop.permute.xlu0 %68
  %72 = vset.pattern.permute.xlu0 0
  %73 = vperm.xlu0 %72, %v43
  %v74 = vpop.permute.xlu0 %73
  %77 = vset.pattern.permute.xlu0 0
  %78 = vperm.xlu0 %77, %v44
  %v79 = vpop.permute.xlu0 %78
  %82 = vset.pattern.permute.xlu0 0
  %83 = vperm.xlu0 %82, %v45
  %v84 = vpop.permute.xlu0 %83
  %v90 = vlaneseq
  %v91 = vshrl.u32 %v90, 7
  %v92 = vsub.s32 0, %v91
  %v93 = vrot.slane %v34, %v92
  %v94 = vlaneseq
  %v95 = vshrl.u32 %v94, 7
  %v96 = vsub.s32 4, %v95
  %v97 = vrot.slane %v34, %v96
  %v98 = vlaneseq
  %v99 = vshrl.u32 %v98, 7
  %v100 = vsub.s32 0, %v99
  %v101 = vrot.slane %v35, %v100
  %v102 = vlaneseq
  %v103 = vshrl.u32 %v102, 7
  %v104 = vsub.s32 4, %v103
  %v105 = vrot.slane %v35, %v104
  %v106 = vlaneseq
  %v107 = vshrl.u32 %v106, 7
  %v108 = vsub.s32 0, %v107
  %v109 = vrot.slane %v36, %v108
  %v110 = vlaneseq
  %v111 = vshrl.u32 %v110, 7
  %v112 = vsub.s32 4, %v111
  %v113 = vrot.slane %v36, %v112
  %v114 = vlaneseq
  %v115 = vshrl.u32 %v114, 7
  %v116 = vsub.s32 0, %v115
  %v117 = vrot.slane %v37, %v116
  %v118 = vlaneseq
  %v119 = vshrl.u32 %v118, 7
  %v120 = vsub.s32 4, %v119
  %v121 = vrot.slane %v37, %v120
  %v130 = vlaneseq
  %v131 = vshrl.u32 %v130, 7
  %v132 = vsub.s32 0, %v131
  %v133 = vrot.slane %v93, %v132
  %v134 = vlaneseq
  %v135 = vshrl.u32 %v134, 7
  %v136 = vsub.s32 0, %v135
  %v137 = vrot.slane %v97, %v136
  %v138 = vlaneseq
  %v139 = vshrl.u32 %v138, 7
  %v140 = vsub.s32 0, %v139
  %v141 = vrot.slane %v101, %v140
  %v142 = vlaneseq
  %v143 = vshrl.u32 %v142, 7
  %v144 = vsub.s32 0, %v143
  %v145 = vrot.slane %v105, %v144
  %v146 = vlaneseq
  %v147 = vshrl.u32 %v146, 7
  %v148 = vsub.s32 0, %v147
  %v149 = vrot.slane %v109, %v148
  %v150 = vlaneseq
  %v151 = vshrl.u32 %v150, 7
  %v152 = vsub.s32 0, %v151
  %v153 = vrot.slane %v113, %v152
  %v154 = vlaneseq
  %v155 = vshrl.u32 %v154, 7
  %v156 = vsub.s32 0, %v155
  %v157 = vrot.slane %v117, %v156
  %v158 = vlaneseq
  %v159 = vshrl.u32 %v158, 7
  %v160 = vsub.s32 0, %v159
  %v161 = vrot.slane %v121, %v160
  %v162 = vmul.f32 %v49, %v133
  %v163 = vmul.f32 %v49, %v137
  %v164 = vmul.f32 %v49, %v141
  %v165 = vmul.f32 %v49, %v145
  %v166 = vmul.f32 %v49, %v149
  %v167 = vmul.f32 %v49, %v153
  %v168 = vmul.f32 %v49, %v157
  %v169 = vmul.f32 %v49, %v161
  %v170 = vmul.f32 %v54, %v133
  %v171 = vmul.f32 %v54, %v137
  %v172 = vmul.f32 %v54, %v141
  %v173 = vmul.f32 %v54, %v145
  %v174 = vmul.f32 %v54, %v149
  %v175 = vmul.f32 %v54, %v153
  %v176 = vmul.f32 %v54, %v157
  %v177 = vmul.f32 %v54, %v161
  %v178 = vmul.f32 %v59, %v133
  %v179 = vmul.f32 %v59, %v137
  %v180 = vmul.f32 %v59, %v141
  %v181 = vmul.f32 %v59, %v145
  %v182 = vmul.f32 %v59, %v149
  %v183 = vmul.f32 %v59, %v153
  %v184 = vmul.f32 %v59, %v157
  %v185 = vmul.f32 %v59, %v161
  %v186 = vmul.f32 %v64, %v133
  %v187 = vmul.f32 %v64, %v137
  %v188 = vmul.f32 %v64, %v141
  %v189 = vmul.f32 %v64, %v145
  %v190 = vmul.f32 %v64, %v149
  %v191 = vmul.f32 %v64, %v153
  %v192 = vmul.f32 %v64, %v157
  %v193 = vmul.f32 %v64, %v161
  %v194 = vmul.f32 %v69, %v133
  %v195 = vmul.f32 %v69, %v137
  %v196 = vmul.f32 %v69, %v141
  %v197 = vmul.f32 %v69, %v145
  %v198 = vmul.f32 %v69, %v149
  %v199 = vmul.f32 %v69, %v153
  %v200 = vmul.f32 %v69, %v157
  %v201 = vmul.f32 %v69, %v161
  %v202 = vmul.f32 %v74, %v133
  %v203 = vmul.f32 %v74, %v137
  %v204 = vmul.f32 %v74, %v141
  %v205 = vmul.f32 %v74, %v145
  %v206 = vmul.f32 %v74, %v149
  %v207 = vmul.f32 %v74, %v153
  %v208 = vmul.f32 %v74, %v157
  %v209 = vmul.f32 %v74, %v161
  %v210 = vmul.f32 %v79, %v133
  %v211 = vmul.f32 %v79, %v137
  %v212 = vmul.f32 %v79, %v141
  %v213 = vmul.f32 %v79, %v145
  %v214 = vmul.f32 %v79, %v149
  %v215 = vmul.f32 %v79, %v153
  %v216 = vmul.f32 %v79, %v157
  %v217 = vmul.f32 %v79, %v161
  %v218 = vmul.f32 %v84, %v133
  %v219 = vmul.f32 %v84, %v137
  %v220 = vmul.f32 %v84, %v141
  %v221 = vmul.f32 %v84, %v145
  %v222 = vmul.f32 %v84, %v149
  %v223 = vmul.f32 %v84, %v153
  %v224 = vmul.f32 %v84, %v157
  %v225 = vmul.f32 %v84, %v161
  %226 = vset.pattern.permute.xlu0 1
  %227 = vperm.xlu0 %226, %v38
  %v228 = vpop.permute.xlu0 %227
  %230 = vset.pattern.permute.xlu0 1
  %231 = vperm.xlu0 %230, %v39
  %v232 = vpop.permute.xlu0 %231
  %234 = vset.pattern.permute.xlu0 1
  %235 = vperm.xlu0 %234, %v40
  %v236 = vpop.permute.xlu0 %235
  %238 = vset.pattern.permute.xlu0 1
  %239 = vperm.xlu0 %238, %v41
  %v240 = vpop.permute.xlu0 %239
  %242 = vset.pattern.permute.xlu0 1
  %243 = vperm.xlu0 %242, %v42
  %v244 = vpop.permute.xlu0 %243
  %246 = vset.pattern.permute.xlu0 1
  %247 = vperm.xlu0 %246, %v43
  %v248 = vpop.permute.xlu0 %247
  %250 = vset.pattern.permute.xlu0 1
  %251 = vperm.xlu0 %250, %v44
  %v252 = vpop.permute.xlu0 %251
  %254 = vset.pattern.permute.xlu0 1
  %255 = vperm.xlu0 %254, %v45
  %v256 = vpop.permute.xlu0 %255
  %v258 = vlaneseq
  %v259 = vshrl.u32 %v258, 7
  %v260 = vsub.s32 1, %v259
  %v261 = vrot.slane %v34, %v260
  %v262 = vlaneseq
  %v263 = vshrl.u32 %v262, 7
  %v264 = vsub.s32 5, %v263
  %v265 = vrot.slane %v34, %v264
  %v266 = vlaneseq
  %v267 = vshrl.u32 %v266, 7
  %v268 = vsub.s32 1, %v267
  %v269 = vrot.slane %v35, %v268
  %v270 = vlaneseq
  %v271 = vshrl.u32 %v270, 7
  %v272 = vsub.s32 5, %v271
  %v273 = vrot.slane %v35, %v272
  %v274 = vlaneseq
  %v275 = vshrl.u32 %v274, 7
  %v276 = vsub.s32 1, %v275
  %v277 = vrot.slane %v36, %v276
  %v278 = vlaneseq
  %v279 = vshrl.u32 %v278, 7
  %v280 = vsub.s32 5, %v279
  %v281 = vrot.slane %v36, %v280
  %v282 = vlaneseq
  %v283 = vshrl.u32 %v282, 7
  %v284 = vsub.s32 1, %v283
  %v285 = vrot.slane %v37, %v284
  %v286 = vlaneseq
  %v287 = vshrl.u32 %v286, 7
  %v288 = vsub.s32 5, %v287
  %v289 = vrot.slane %v37, %v288
  %v298 = vlaneseq
  %v299 = vshrl.u32 %v298, 7
  %v300 = vsub.s32 1, %v299
  %v301 = vrot.slane %v261, %v300
  %v302 = vlaneseq
  %v303 = vshrl.u32 %v302, 7
  %v304 = vsub.s32 1, %v303
  %v305 = vrot.slane %v265, %v304
  %v306 = vlaneseq
  %v307 = vshrl.u32 %v306, 7
  %v308 = vsub.s32 1, %v307
  %v309 = vrot.slane %v269, %v308
  %v310 = vlaneseq
  %v311 = vshrl.u32 %v310, 7
  %v312 = vsub.s32 1, %v311
  %v313 = vrot.slane %v273, %v312
  %v314 = vlaneseq
  %v315 = vshrl.u32 %v314, 7
  %v316 = vsub.s32 1, %v315
  %v317 = vrot.slane %v277, %v316
  %v318 = vlaneseq
  %v319 = vshrl.u32 %v318, 7
  %v320 = vsub.s32 1, %v319
  %v321 = vrot.slane %v281, %v320
  %v322 = vlaneseq
  %v323 = vshrl.u32 %v322, 7
  %v324 = vsub.s32 1, %v323
  %v325 = vrot.slane %v285, %v324
  %v326 = vlaneseq
  %v327 = vshrl.u32 %v326, 7
  %v328 = vsub.s32 1, %v327
  %v329 = vrot.slane %v289, %v328
  %v330 = vmul.f32 %v228, %v301
  %v331 = vmul.f32 %v228, %v305
  %v332 = vmul.f32 %v228, %v309
  %v333 = vmul.f32 %v228, %v313
  %v334 = vmul.f32 %v228, %v317
  %v335 = vmul.f32 %v228, %v321
  %v336 = vmul.f32 %v228, %v325
  %v337 = vmul.f32 %v228, %v329
  %v338 = vmul.f32 %v232, %v301
  %v339 = vmul.f32 %v232, %v305
  %v340 = vmul.f32 %v232, %v309
  %v341 = vmul.f32 %v232, %v313
  %v342 = vmul.f32 %v232, %v317
  %v343 = vmul.f32 %v232, %v321
  %v344 = vmul.f32 %v232, %v325
  %v345 = vmul.f32 %v232, %v329
  %v346 = vmul.f32 %v236, %v301
  %v347 = vmul.f32 %v236, %v305
  %v348 = vmul.f32 %v236, %v309
  %v349 = vmul.f32 %v236, %v313
  %v350 = vmul.f32 %v236, %v317
  %v351 = vmul.f32 %v236, %v321
  %v352 = vmul.f32 %v236, %v325
  %v353 = vmul.f32 %v236, %v329
  %v354 = vmul.f32 %v240, %v301
  %v355 = vmul.f32 %v240, %v305
  %v356 = vmul.f32 %v240, %v309
  %v357 = vmul.f32 %v240, %v313
  %v358 = vmul.f32 %v240, %v317
  %v359 = vmul.f32 %v240, %v321
  %v360 = vmul.f32 %v240, %v325
  %v361 = vmul.f32 %v240, %v329
  %v362 = vmul.f32 %v244, %v301
  %v363 = vmul.f32 %v244, %v305
  %v364 = vmul.f32 %v244, %v309
  %v365 = vmul.f32 %v244, %v313
  %v366 = vmul.f32 %v244, %v317
  %v367 = vmul.f32 %v244, %v321
  %v368 = vmul.f32 %v244, %v325
  %v369 = vmul.f32 %v244, %v329
  %v370 = vmul.f32 %v248, %v301
  %v371 = vmul.f32 %v248, %v305
  %v372 = vmul.f32 %v248, %v309
  %v373 = vmul.f32 %v248, %v313
  %v374 = vmul.f32 %v248, %v317
  %v375 = vmul.f32 %v248, %v321
  %v376 = vmul.f32 %v248, %v325
  %v377 = vmul.f32 %v248, %v329
  %v378 = vmul.f32 %v252, %v301
  %v379 = vmul.f32 %v252, %v305
  %v380 = vmul.f32 %v252, %v309
  %v381 = vmul.f32 %v252, %v313
  %v382 = vmul.f32 %v252, %v317
  %v383 = vmul.f32 %v252, %v321
  %v384 = vmul.f32 %v252, %v325
  %v385 = vmul.f32 %v252, %v329
  %v386 = vmul.f32 %v256, %v301
  %v387 = vmul.f32 %v256, %v305
  %v388 = vmul.f32 %v256, %v309
  %v389 = vmul.f32 %v256, %v313
  %v390 = vmul.f32 %v256, %v317
  %v391 = vmul.f32 %v256, %v321
  %v392 = vmul.f32 %v256, %v325
  %v393 = vmul.f32 %v256, %v329
  %v394 = vadd.f32 %v162, %v330
  %v395 = vadd.f32 %v163, %v331
  %v396 = vadd.f32 %v164, %v332
  %v397 = vadd.f32 %v165, %v333
  %v398 = vadd.f32 %v166, %v334
  %v399 = vadd.f32 %v167, %v335
  %v400 = vadd.f32 %v168, %v336
  %v401 = vadd.f32 %v169, %v337
  %v402 = vadd.f32 %v170, %v338
  %v403 = vadd.f32 %v171, %v339
  %v404 = vadd.f32 %v172, %v340
  %v405 = vadd.f32 %v173, %v341
  %v406 = vadd.f32 %v174, %v342
  %v407 = vadd.f32 %v175, %v343
  %v408 = vadd.f32 %v176, %v344
  %v409 = vadd.f32 %v177, %v345
  %v410 = vadd.f32 %v178, %v346
  %v411 = vadd.f32 %v179, %v347
  %v412 = vadd.f32 %v180, %v348
  %v413 = vadd.f32 %v181, %v349
  %v414 = vadd.f32 %v182, %v350
  %v415 = vadd.f32 %v183, %v351
  %v416 = vadd.f32 %v184, %v352
  %v417 = vadd.f32 %v185, %v353
  %v418 = vadd.f32 %v186, %v354
  %v419 = vadd.f32 %v187, %v355
  %v420 = vadd.f32 %v188, %v356
  %v421 = vadd.f32 %v189, %v357
  %v422 = vadd.f32 %v190, %v358
  %v423 = vadd.f32 %v191, %v359
  %v424 = vadd.f32 %v192, %v360
  %v425 = vadd.f32 %v193, %v361
  %v426 = vadd.f32 %v194, %v362
  %v427 = vadd.f32 %v195, %v363
  %v428 = vadd.f32 %v196, %v364
  %v429 = vadd.f32 %v197, %v365
  %v430 = vadd.f32 %v198, %v366
  %v431 = vadd.f32 %v199, %v367
  %v432 = vadd.f32 %v200, %v368
  %v433 = vadd.f32 %v201, %v369
  %v434 = vadd.f32 %v202, %v370
  %v435 = vadd.f32 %v203, %v371
  %v436 = vadd.f32 %v204, %v372
  %v437 = vadd.f32 %v205, %v373
  %v438 = vadd.f32 %v206, %v374
  %v439 = vadd.f32 %v207, %v375
  %v440 = vadd.f32 %v208, %v376
  %v441 = vadd.f32 %v209, %v377
  %v442 = vadd.f32 %v210, %v378
  %v443 = vadd.f32 %v211, %v379
  %v444 = vadd.f32 %v212, %v380
  %v445 = vadd.f32 %v213, %v381
  %v446 = vadd.f32 %v214, %v382
  %v447 = vadd.f32 %v215, %v383
  %v448 = vadd.f32 %v216, %v384
  %v449 = vadd.f32 %v217, %v385
  %v450 = vadd.f32 %v218, %v386
  %v451 = vadd.f32 %v219, %v387
  %v452 = vadd.f32 %v220, %v388
  %v453 = vadd.f32 %v221, %v389
  %v454 = vadd.f32 %v222, %v390
  %v455 = vadd.f32 %v223, %v391
  %v456 = vadd.f32 %v224, %v392
  %v457 = vadd.f32 %v225, %v393
  %458 = vset.pattern.permute.xlu0 2
  %459 = vperm.xlu0 %458, %v38
  %v460 = vpop.permute.xlu0 %459
  %462 = vset.pattern.permute.xlu0 2
  %463 = vperm.xlu0 %462, %v39
  %v464 = vpop.permute.xlu0 %463
  %466 = vset.pattern.permute.xlu0 2
  %467 = vperm.xlu0 %466, %v40
  %v468 = vpop.permute.xlu0 %467
  %470 = vset.pattern.permute.xlu0 2
  %471 = vperm.xlu0 %470, %v41
  %v472 = vpop.permute.xlu0 %471
  %474 = vset.pattern.permute.xlu0 2
  %475 = vperm.xlu0 %474, %v42
  %v476 = vpop.permute.xlu0 %475
  %478 = vset.pattern.permute.xlu0 2
  %479 = vperm.xlu0 %478, %v43
  %v480 = vpop.permute.xlu0 %479
  %482 = vset.pattern.permute.xlu0 2
  %483 = vperm.xlu0 %482, %v44
  %v484 = vpop.permute.xlu0 %483
  %486 = vset.pattern.permute.xlu0 2
  %487 = vperm.xlu0 %486, %v45
  %v488 = vpop.permute.xlu0 %487
  %v490 = vlaneseq
  %v491 = vshrl.u32 %v490, 7
  %v492 = vsub.s32 2, %v491
  %v493 = vrot.slane %v34, %v492
  %v494 = vlaneseq
  %v495 = vshrl.u32 %v494, 7
  %v496 = vsub.s32 6, %v495
  %v497 = vrot.slane %v34, %v496
  %v498 = vlaneseq
  %v499 = vshrl.u32 %v498, 7
  %v500 = vsub.s32 2, %v499
  %v501 = vrot.slane %v35, %v500
  %v502 = vlaneseq
  %v503 = vshrl.u32 %v502, 7
  %v504 = vsub.s32 6, %v503
  %v505 = vrot.slane %v35, %v504
  %v506 = vlaneseq
  %v507 = vshrl.u32 %v506, 7
  %v508 = vsub.s32 2, %v507
  %v509 = vrot.slane %v36, %v508
  %v510 = vlaneseq
  %v511 = vshrl.u32 %v510, 7
  %v512 = vsub.s32 6, %v511
  %v513 = vrot.slane %v36, %v512
  %v514 = vlaneseq
  %v515 = vshrl.u32 %v514, 7
  %v516 = vsub.s32 2, %v515
  %v517 = vrot.slane %v37, %v516
  %v518 = vlaneseq
  %v519 = vshrl.u32 %v518, 7
  %v520 = vsub.s32 6, %v519
  %v521 = vrot.slane %v37, %v520
  %v530 = vlaneseq
  %v531 = vshrl.u32 %v530, 7
  %v532 = vsub.s32 2, %v531
  %v533 = vrot.slane %v493, %v532
  %v534 = vlaneseq
  %v535 = vshrl.u32 %v534, 7
  %v536 = vsub.s32 2, %v535
  %v537 = vrot.slane %v497, %v536
  %v538 = vlaneseq
  %v539 = vshrl.u32 %v538, 7
  %v540 = vsub.s32 2, %v539
  %v541 = vrot.slane %v501, %v540
  %v542 = vlaneseq
  %v543 = vshrl.u32 %v542, 7
  %v544 = vsub.s32 2, %v543
  %v545 = vrot.slane %v505, %v544
  %v546 = vlaneseq
  %v547 = vshrl.u32 %v546, 7
  %v548 = vsub.s32 2, %v547
  %v549 = vrot.slane %v509, %v548
  %v550 = vlaneseq
  %v551 = vshrl.u32 %v550, 7
  %v552 = vsub.s32 2, %v551
  %v553 = vrot.slane %v513, %v552
  %v554 = vlaneseq
  %v555 = vshrl.u32 %v554, 7
  %v556 = vsub.s32 2, %v555
  %v557 = vrot.slane %v517, %v556
  %v558 = vlaneseq
  %v559 = vshrl.u32 %v558, 7
  %v560 = vsub.s32 2, %v559
  %v561 = vrot.slane %v521, %v560
  %v562 = vmul.f32 %v460, %v533
  %v563 = vmul.f32 %v460, %v537
  %v564 = vmul.f32 %v460, %v541
  %v565 = vmul.f32 %v460, %v545
  %v566 = vmul.f32 %v460, %v549
  %v567 = vmul.f32 %v460, %v553
  %v568 = vmul.f32 %v460, %v557
  %v569 = vmul.f32 %v460, %v561
  %v570 = vmul.f32 %v464, %v533
  %v571 = vmul.f32 %v464, %v537
  %v572 = vmul.f32 %v464, %v541
  %v573 = vmul.f32 %v464, %v545
  %v574 = vmul.f32 %v464, %v549
  %v575 = vmul.f32 %v464, %v553
  %v576 = vmul.f32 %v464, %v557
  %v577 = vmul.f32 %v464, %v561
  %v578 = vmul.f32 %v468, %v533
  %v579 = vmul.f32 %v468, %v537
  %v580 = vmul.f32 %v468, %v541
  %v581 = vmul.f32 %v468, %v545
  %v582 = vmul.f32 %v468, %v549
  %v583 = vmul.f32 %v468, %v553
  %v584 = vmul.f32 %v468, %v557
  %v585 = vmul.f32 %v468, %v561
  %v586 = vmul.f32 %v472, %v533
  %v587 = vmul.f32 %v472, %v537
  %v588 = vmul.f32 %v472, %v541
  %v589 = vmul.f32 %v472, %v545
  %v590 = vmul.f32 %v472, %v549
  %v591 = vmul.f32 %v472, %v553
  %v592 = vmul.f32 %v472, %v557
  %v593 = vmul.f32 %v472, %v561
  %v594 = vmul.f32 %v476, %v533
  %v595 = vmul.f32 %v476, %v537
  %v596 = vmul.f32 %v476, %v541
  %v597 = vmul.f32 %v476, %v545
  %v598 = vmul.f32 %v476, %v549
  %v599 = vmul.f32 %v476, %v553
  %v600 = vmul.f32 %v476, %v557
  %v601 = vmul.f32 %v476, %v561
  %v602 = vmul.f32 %v480, %v533
  %v603 = vmul.f32 %v480, %v537
  %v604 = vmul.f32 %v480, %v541
  %v605 = vmul.f32 %v480, %v545
  %v606 = vmul.f32 %v480, %v549
  %v607 = vmul.f32 %v480, %v553
  %v608 = vmul.f32 %v480, %v557
  %v609 = vmul.f32 %v480, %v561
  %v610 = vmul.f32 %v484, %v533
  %v611 = vmul.f32 %v484, %v537
  %v612 = vmul.f32 %v484, %v541
  %v613 = vmul.f32 %v484, %v545
  %v614 = vmul.f32 %v484, %v549
  %v615 = vmul.f32 %v484, %v553
  %v616 = vmul.f32 %v484, %v557
  %v617 = vmul.f32 %v484, %v561
  %v618 = vmul.f32 %v488, %v533
  %v619 = vmul.f32 %v488, %v537
  %v620 = vmul.f32 %v488, %v541
  %v621 = vmul.f32 %v488, %v545
  %v622 = vmul.f32 %v488, %v549
  %v623 = vmul.f32 %v488, %v553
  %v624 = vmul.f32 %v488, %v557
  %v625 = vmul.f32 %v488, %v561
  %v626 = vadd.f32 %v394, %v562
  %v627 = vadd.f32 %v395, %v563
  %v628 = vadd.f32 %v396, %v564
  %v629 = vadd.f32 %v397, %v565
  %v630 = vadd.f32 %v398, %v566
  %v631 = vadd.f32 %v399, %v567
  %v632 = vadd.f32 %v400, %v568
  %v633 = vadd.f32 %v401, %v569
  %v634 = vadd.f32 %v402, %v570
  %v635 = vadd.f32 %v403, %v571
  %v636 = vadd.f32 %v404, %v572
  %v637 = vadd.f32 %v405, %v573
  %v638 = vadd.f32 %v406, %v574
  %v639 = vadd.f32 %v407, %v575
  %v640 = vadd.f32 %v408, %v576
  %v641 = vadd.f32 %v409, %v577
  %v642 = vadd.f32 %v410, %v578
  %v643 = vadd.f32 %v411, %v579
  %v644 = vadd.f32 %v412, %v580
  %v645 = vadd.f32 %v413, %v581
  %v646 = vadd.f32 %v414, %v582
  %v647 = vadd.f32 %v415, %v583
  %v648 = vadd.f32 %v416, %v584
  %v649 = vadd.f32 %v417, %v585
  %v650 = vadd.f32 %v418, %v586
  %v651 = vadd.f32 %v419, %v587
  %v652 = vadd.f32 %v420, %v588
  %v653 = vadd.f32 %v421, %v589
  %v654 = vadd.f32 %v422, %v590
  %v655 = vadd.f32 %v423, %v591
  %v656 = vadd.f32 %v424, %v592
  %v657 = vadd.f32 %v425, %v593
  %v658 = vadd.f32 %v426, %v594
  %v659 = vadd.f32 %v427, %v595
  %v660 = vadd.f32 %v428, %v596
  %v661 = vadd.f32 %v429, %v597
  %v662 = vadd.f32 %v430, %v598
  %v663 = vadd.f32 %v431, %v599
  %v664 = vadd.f32 %v432, %v600
  %v665 = vadd.f32 %v433, %v601
  %v666 = vadd.f32 %v434, %v602
  %v667 = vadd.f32 %v435, %v603
  %v668 = vadd.f32 %v436, %v604
  %v669 = vadd.f32 %v437, %v605
  %v670 = vadd.f32 %v438, %v606
  %v671 = vadd.f32 %v439, %v607
  %v672 = vadd.f32 %v440, %v608
  %v673 = vadd.f32 %v441, %v609
  %v674 = vadd.f32 %v442, %v610
  %v675 = vadd.f32 %v443, %v611
  %v676 = vadd.f32 %v444, %v612
  %v677 = vadd.f32 %v445, %v613
  %v678 = vadd.f32 %v446, %v614
  %v679 = vadd.f32 %v447, %v615
  %v680 = vadd.f32 %v448, %v616
  %v681 = vadd.f32 %v449, %v617
  %v682 = vadd.f32 %v450, %v618
  %v683 = vadd.f32 %v451, %v619
  %v684 = vadd.f32 %v452, %v620
  %v685 = vadd.f32 %v453, %v621
  %v686 = vadd.f32 %v454, %v622
  %v687 = vadd.f32 %v455, %v623
  %v688 = vadd.f32 %v456, %v624
  %v689 = vadd.f32 %v457, %v625
  %v690 = vld [vmem:[%s2] sm:$0xff]
  %v691 = vld [vmem:[%s2 + $0x8] sm:$0xff]
  %v692 = vld [vmem:[%s2 + $0x10] sm:$0xff]
  %v693 = vld [vmem:[%s2 + $0x18] sm:$0xff]
  %v694 = vld [vmem:[%s2 + $0x20] sm:$0xff]
  %v695 = vld [vmem:[%s2 + $0x28] sm:$0xff]
  %v696 = vld [vmem:[%s2 + $0x30] sm:$0xff]
  %v697 = vld [vmem:[%s2 + $0x38] sm:$0xff]
  %699 = vset.pattern.permute.xlu0 0
  %700 = vperm.xlu0 %699, %v690
  %v701 = vpop.permute.xlu0 %700
  %704 = vset.pattern.permute.xlu0 0
  %705 = vperm.xlu0 %704, %v691
  %v706 = vpop.permute.xlu0 %705
  %709 = vset.pattern.permute.xlu0 0
  %710 = vperm.xlu0 %709, %v692
  %v711 = vpop.permute.xlu0 %710
  %714 = vset.pattern.permute.xlu0 0
  %715 = vperm.xlu0 %714, %v693
  %v716 = vpop.permute.xlu0 %715
  %719 = vset.pattern.permute.xlu0 0
  %720 = vperm.xlu0 %719, %v694
  %v721 = vpop.permute.xlu0 %720
  %724 = vset.pattern.permute.xlu0 0
  %725 = vperm.xlu0 %724, %v695
  %v726 = vpop.permute.xlu0 %725
  %729 = vset.pattern.permute.xlu0 0
  %730 = vperm.xlu0 %729, %v696
  %v731 = vpop.permute.xlu0 %730
  %734 = vset.pattern.permute.xlu0 0
  %735 = vperm.xlu0 %734, %v697
  %v736 = vpop.permute.xlu0 %735
  %v738 = vadd.f32 %v626, %v701
  %v739 = vadd.f32 %v627, %v701
  %v740 = vadd.f32 %v628, %v701
  %v741 = vadd.f32 %v629, %v701
  %v742 = vadd.f32 %v630, %v701
  %v743 = vadd.f32 %v631, %v701
  %v744 = vadd.f32 %v632, %v701
  %v745 = vadd.f32 %v633, %v701
  %v746 = vadd.f32 %v634, %v706
  %v747 = vadd.f32 %v635, %v706
  %v748 = vadd.f32 %v636, %v706
  %v749 = vadd.f32 %v637, %v706
  %v750 = vadd.f32 %v638, %v706
  %v751 = vadd.f32 %v639, %v706
  %v752 = vadd.f32 %v640, %v706
  %v753 = vadd.f32 %v641, %v706
  %v754 = vadd.f32 %v642, %v711
  %v755 = vadd.f32 %v643, %v711
  %v756 = vadd.f32 %v644, %v711
  %v757 = vadd.f32 %v645, %v711
  %v758 = vadd.f32 %v646, %v711
  %v759 = vadd.f32 %v647, %v711
  %v760 = vadd.f32 %v648, %v711
  %v761 = vadd.f32 %v649, %v711
  %v762 = vadd.f32 %v650, %v716
  %v763 = vadd.f32 %v651, %v716
  %v764 = vadd.f32 %v652, %v716
  %v765 = vadd.f32 %v653, %v716
  %v766 = vadd.f32 %v654, %v716
  %v767 = vadd.f32 %v655, %v716
  %v768 = vadd.f32 %v656, %v716
  %v769 = vadd.f32 %v657, %v716
  %v770 = vadd.f32 %v658, %v721
  %v771 = vadd.f32 %v659, %v721
  %v772 = vadd.f32 %v660, %v721
  %v773 = vadd.f32 %v661, %v721
  %v774 = vadd.f32 %v662, %v721
  %v775 = vadd.f32 %v663, %v721
  %v776 = vadd.f32 %v664, %v721
  %v777 = vadd.f32 %v665, %v721
  %v778 = vadd.f32 %v666, %v726
  %v779 = vadd.f32 %v667, %v726
  %v780 = vadd.f32 %v668, %v726
  %v781 = vadd.f32 %v669, %v726
  %v782 = vadd.f32 %v670, %v726
  %v783 = vadd.f32 %v671, %v726
  %v784 = vadd.f32 %v672, %v726
  %v785 = vadd.f32 %v673, %v726
  %v786 = vadd.f32 %v674, %v731
  %v787 = vadd.f32 %v675, %v731
  %v788 = vadd.f32 %v676, %v731
  %v789 = vadd.f32 %v677, %v731
  %v790 = vadd.f32 %v678, %v731
  %v791 = vadd.f32 %v679, %v731
  %v792 = vadd.f32 %v680, %v731
  %v793 = vadd.f32 %v681, %v731
  %v794 = vadd.f32 %v682, %v736
  %v795 = vadd.f32 %v683, %v736
  %v796 = vadd.f32 %v684, %v736
  %v797 = vadd.f32 %v685, %v736
  %v798 = vadd.f32 %v686, %v736
  %v799 = vadd.f32 %v687, %v736
  %v800 = vadd.f32 %v688, %v736
  %v801 = vadd.f32 %v689, %v736
  %v802 = vmax.f32 %v738, 0.0
  %v803 = vmax.f32 %v739, 0.0
  %v804 = vmax.f32 %v740, 0.0
  %v805 = vmax.f32 %v741, 0.0
  %v806 = vmax.f32 %v742, 0.0
  %v807 = vmax.f32 %v743, 0.0
  %v808 = vmax.f32 %v744, 0.0
  %v809 = vmax.f32 %v745, 0.0
  %v810 = vmax.f32 %v746, 0.0
  %v811 = vmax.f32 %v747, 0.0
  %v812 = vmax.f32 %v748, 0.0
  %v813 = vmax.f32 %v749, 0.0
  %v814 = vmax.f32 %v750, 0.0
  %v815 = vmax.f32 %v751, 0.0
  %v816 = vmax.f32 %v752, 0.0
  %v817 = vmax.f32 %v753, 0.0
  %v818 = vmax.f32 %v754, 0.0
  %v819 = vmax.f32 %v755, 0.0
  %v820 = vmax.f32 %v756, 0.0
  %v821 = vmax.f32 %v757, 0.0
  %v822 = vmax.f32 %v758, 0.0
  %v823 = vmax.f32 %v759, 0.0
  %v824 = vmax.f32 %v760, 0.0
  %v825 = vmax.f32 %v761, 0.0
  %v826 = vmax.f32 %v762, 0.0
  %v827 = vmax.f32 %v763, 0.0
  %v828 = vmax.f32 %v764, 0.0
  %v829 = vmax.f32 %v765, 0.0
  %v830 = vmax.f32 %v766, 0.0
  %v831 = vmax.f32 %v767, 0.0
  %v832 = vmax.f32 %v768, 0.0
  %v833 = vmax.f32 %v769, 0.0
  %v834 = vmax.f32 %v770, 0.0
  %v835 = vmax.f32 %v771, 0.0
  %v836 = vmax.f32 %v772, 0.0
  %v837 = vmax.f32 %v773, 0.0
  %v838 = vmax.f32 %v774, 0.0
  %v839 = vmax.f32 %v775, 0.0
  %v840 = vmax.f32 %v776, 0.0
  %v841 = vmax.f32 %v777, 0.0
  %v842 = vmax.f32 %v778, 0.0
  %v843 = vmax.f32 %v779, 0.0
  %v844 = vmax.f32 %v780, 0.0
  %v845 = vmax.f32 %v781, 0.0
  %v846 = vmax.f32 %v782, 0.0
  %v847 = vmax.f32 %v783, 0.0
  %v848 = vmax.f32 %v784, 0.0
  %v849 = vmax.f32 %v785, 0.0
  %v850 = vmax.f32 %v786, 0.0
  %v851 = vmax.f32 %v787, 0.0
  %v852 = vmax.f32 %v788, 0.0
  %v853 = vmax.f32 %v789, 0.0
  %v854 = vmax.f32 %v790, 0.0
  %v855 = vmax.f32 %v791, 0.0
  %v856 = vmax.f32 %v792, 0.0
  %v857 = vmax.f32 %v793, 0.0
  %v858 = vmax.f32 %v794, 0.0
  %v859 = vmax.f32 %v795, 0.0
  %v860 = vmax.f32 %v796, 0.0
  %v861 = vmax.f32 %v797, 0.0
  %v862 = vmax.f32 %v798, 0.0
  %v863 = vmax.f32 %v799, 0.0
  %v864 = vmax.f32 %v800, 0.0
  %v865 = vmax.f32 %v801, 0.0
  %v866 = vld [vmem:[%s3] sm:$0xff]
  %v867 = vld [vmem:[%s3 + $0x8] sm:$0xff]
  %v868 = vld [vmem:[%s3 + $0x10] sm:$0xff]
  %v869 = vld [vmem:[%s3 + $0x18] sm:$0xff]
  %v870 = vld [vmem:[%s3 + $0x20] sm:$0xff]
  %v871 = vld [vmem:[%s3 + $0x28] sm:$0xff]
  %v872 = vld [vmem:[%s3 + $0x30] sm:$0xff]
  %v873 = vld [vmem:[%s3 + $0x38] sm:$0xff]
  %v874 = vld [vmem:[%s3 + $0x40] sm:$0xff]
  %v875 = vld [vmem:[%s3 + $0x48] sm:$0xff]
  %v876 = vld [vmem:[%s3 + $0x50] sm:$0xff]
  %v877 = vld [vmem:[%s3 + $0x58] sm:$0xff]
  %v878 = vld [vmem:[%s3 + $0x60] sm:$0xff]
  %v879 = vld [vmem:[%s3 + $0x68] sm:$0xff]
  %v880 = vld [vmem:[%s3 + $0x70] sm:$0xff]
  %v881 = vld [vmem:[%s3 + $0x78] sm:$0xff]
  %v882 = vld [vmem:[%s4] sm:$0xff]
  %v883 = vld [vmem:[%s4 + $0x8] sm:$0xff]
  %v884 = vld [vmem:[%s4 + $0x10] sm:$0xff]
  %v885 = vld [vmem:[%s4 + $0x18] sm:$0xff]
  %v886 = vld [vmem:[%s4 + $0x20] sm:$0xff]
  %v887 = vld [vmem:[%s4 + $0x28] sm:$0xff]
  %v888 = vld [vmem:[%s4 + $0x30] sm:$0xff]
  %v889 = vld [vmem:[%s4 + $0x38] sm:$0xff]
  %v890 = vld [vmem:[%s4 + $0x40] sm:$0xff]
  %v891 = vld [vmem:[%s4 + $0x48] sm:$0xff]
  %v892 = vld [vmem:[%s4 + $0x50] sm:$0xff]
  %v893 = vld [vmem:[%s4 + $0x58] sm:$0xff]
  %v894 = vld [vmem:[%s4 + $0x60] sm:$0xff]
  %v895 = vld [vmem:[%s4 + $0x68] sm:$0xff]
  %v896 = vld [vmem:[%s4 + $0x70] sm:$0xff]
  %v897 = vld [vmem:[%s4 + $0x78] sm:$0xff]
  %899 = vset.pattern.permute.xlu0 0
  %900 = vperm.xlu0 %899, %v882
  %v901 = vpop.permute.xlu0 %900
  %904 = vset.pattern.permute.xlu0 0
  %905 = vperm.xlu0 %904, %v883
  %v906 = vpop.permute.xlu0 %905
  %909 = vset.pattern.permute.xlu0 0
  %910 = vperm.xlu0 %909, %v884
  %v911 = vpop.permute.xlu0 %910
  %914 = vset.pattern.permute.xlu0 0
  %915 = vperm.xlu0 %914, %v885
  %v916 = vpop.permute.xlu0 %915
  %919 = vset.pattern.permute.xlu0 0
  %920 = vperm.xlu0 %919, %v886
  %v921 = vpop.permute.xlu0 %920
  %924 = vset.pattern.permute.xlu0 0
  %925 = vperm.xlu0 %924, %v887
  %v926 = vpop.permute.xlu0 %925
  %929 = vset.pattern.permute.xlu0 0
  %930 = vperm.xlu0 %929, %v888
  %v931 = vpop.permute.xlu0 %930
  %934 = vset.pattern.permute.xlu0 0
  %935 = vperm.xlu0 %934, %v889
  %v936 = vpop.permute.xlu0 %935
  %939 = vset.pattern.permute.xlu0 0
  %940 = vperm.xlu0 %939, %v890
  %v941 = vpop.permute.xlu0 %940
  %944 = vset.pattern.permute.xlu0 0
  %945 = vperm.xlu0 %944, %v891
  %v946 = vpop.permute.xlu0 %945
  %949 = vset.pattern.permute.xlu0 0
  %950 = vperm.xlu0 %949, %v892
  %v951 = vpop.permute.xlu0 %950
  %954 = vset.pattern.permute.xlu0 0
  %955 = vperm.xlu0 %954, %v893
  %v956 = vpop.permute.xlu0 %955
  %959 = vset.pattern.permute.xlu0 0
  %960 = vperm.xlu0 %959, %v894
  %v961 = vpop.permute.xlu0 %960
  %964 = vset.pattern.permute.xlu0 0
  %965 = vperm.xlu0 %964, %v895
  %v966 = vpop.permute.xlu0 %965
  %969 = vset.pattern.permute.xlu0 0
  %970 = vperm.xlu0 %969, %v896
  %v971 = vpop.permute.xlu0 %970
  %974 = vset.pattern.permute.xlu0 0
  %975 = vperm.xlu0 %974, %v897
  %v976 = vpop.permute.xlu0 %975
  %vm978 = vcmask 523264
  %v980 = vsel %vm978, %v866, 0
  %v983 = vsel %vm978, %v867, 0
  %v986 = vsel %vm978, %v868, 0
  %v989 = vsel %vm978, %v869, 0
  %v992 = vsel %vm978, %v870, 0
  %v995 = vsel %vm978, %v871, 0
  %v998 = vsel %vm978, %v872, 0
  %v1001 = vsel %vm978, %v873, 0
  %v1004 = vsel %vm978, %v874, 0
  %v1007 = vsel %vm978, %v875, 0
  %v1010 = vsel %vm978, %v876, 0
  %v1013 = vsel %vm978, %v877, 0
  %v1016 = vsel %vm978, %v878, 0
  %v1019 = vsel %vm978, %v879, 0
  %v1022 = vsel %vm978, %v880, 0
  %v1025 = vsel %vm978, %v881, 0
  %1027 = vmatprep.subr.mxu0 %v803
  %1028 = vmatpush1.msra.mxu0 %v802
  %1029 = vmatprep.subr.mxu0 %v811
  %1030 = vmatpush1.msra.mxu0 %v810
  %1031 = vmatprep.subr.mxu0 %v819
  %1032 = vmatpush1.msra.mxu0 %v818
  %1033 = vmatprep.subr.mxu0 %v827
  %1034 = vmatpush1.msra.mxu0 %v826
  %1035 = vmatprep.subr.mxu0 %v835
  %1036 = vmatpush1.msra.mxu0 %v834
  %1037 = vmatprep.subr.mxu0 %v843
  %1038 = vmatpush1.msra.mxu0 %v842
  %1039 = vmatprep.subr.mxu0 %v851
  %1040 = vmatpush1.msra.mxu0 %v850
  %1041 = vmatprep.subr.mxu0 %v859
  %1042 = vmatpush1.msra.mxu0 %v858
  %1043 = vmatprep.subr.mxu0 0.0
  %1044 = vmatpush1.msra.mxu0 0.0
  %1045 = vmatprep.subr.mxu0 0.0
  %1046 = vmatpush1.msra.mxu0 0.0
  %1047 = vmatprep.subr.mxu0 0.0
  %1048 = vmatpush1.msra.mxu0 0.0
  %1049 = vmatprep.subr.mxu0 0.0
  %1050 = vmatpush1.msra.mxu0 0.0
  %1051 = vmatprep.subr.mxu0 0.0
  %1052 = vmatpush1.msra.mxu0 0.0
  %1053 = vmatprep.subr.mxu0 0.0
  %1054 = vmatpush1.msra.mxu0 0.0
  %1055 = vmatprep.subr.mxu0 0.0
  %1056 = vmatpush1.msra.mxu0 0.0
  %1057 = vmatprep.subr.mxu0 0.0
  %1058 = vmatpush1.msra.mxu0 0.0
  %1059 = vmatprep.subr.mxu0 0.0
  %1060 = vmatpush1.msra.mxu0 0.0
  %1061 = vmatprep.subr.mxu0 0.0
  %1062 = vmatpush1.msra.mxu0 0.0
  %1063 = vmatprep.subr.mxu0 0.0
  %1064 = vmatpush1.msra.mxu0 0.0
  %1065 = vmatprep.subr.mxu0 0.0
  %1066 = vmatpush1.msra.mxu0 0.0
  %1067 = vmatprep.subr.mxu0 0.0
  %1068 = vmatpush1.msra.mxu0 0.0
  %1069 = vmatprep.subr.mxu0 0.0
  %1070 = vmatpush1.msra.mxu0 0.0
  %1071 = vmatprep.subr.mxu0 0.0
  %1072 = vmatpush1.msra.mxu0 0.0
  %1073 = vmatprep.subr.mxu0 0.0
  %1074 = vmatpush1.msra.mxu0 0.0
  %1075 = vmatprep.subr.mxu0 0.0
  %1076 = vmatpush1.msra.mxu0 0.0
  %1077 = vmatprep.subr.mxu0 0.0
  %1078 = vmatpush1.msra.mxu0 0.0
  %1079 = vmatprep.subr.mxu0 0.0
  %1080 = vmatpush1.msra.mxu0 0.0
  %1081 = vmatprep.subr.mxu0 0.0
  %1082 = vmatpush1.msra.mxu0 0.0
  %1083 = vmatprep.subr.mxu0 0.0
  %1084 = vmatpush1.msra.mxu0 0.0
  %1085 = vmatprep.subr.mxu0 0.0
  %1086 = vmatpush1.msra.mxu0 0.0
  %1087 = vmatprep.subr.mxu0 0.0
  %1088 = vmatpush1.msra.mxu0 0.0
  %1089 = vmatprep.subr.mxu0 0.0
  %1090 = vmatpush1.msra.mxu0 0.0
  %1091 = vmatprep.mubr.f32.mxu0 0.0
  %1092 = vmatmul.mubr.f32.gmra.mrb[0].mxu0 %v980
  %v1093 = vpop.f32.mrb[0].mxu0
  %v1094 = vadd.f32 %v901, %v1093
  %v1095 = vpop.f32.mrb[0].mxu0
  %v1096 = vadd.f32 %v901, %v1095
  %1097 = vmatprep.mubr.f32.mxu0 0.0
  %1098 = vmatmul.mubr.f32.gmra.mrb[0].mxu0 %v983
  %v1099 = vpop.f32.mrb[0].mxu0
  %v1100 = vadd.f32 %v906, %v1099
  %v1101 = vpop.f32.mrb[0].mxu0
  %v1102 = vadd.f32 %v906, %v1101
  %1103 = vmatprep.mubr.f32.mxu0 0.0
  %1104 = vmatmul.mubr.f32.gmra.mrb[0].mxu0 %v986
  %v1105 = vpop.f32.mrb[0].mxu0
  %v1106 = vadd.f32 %v911, %v1105
  %v1107 = vpop.f32.mrb[0].mxu0
  %v1108 = vadd.f32 %v911, %v1107
  %1109 = vmatprep.mubr.f32.mxu0 0.0
  %1110 = vmatmul.mubr.f32.gmra.mrb[0].mxu0 %v989
  %v1111 = vpop.f32.mrb[0].mxu0
  %v1112 = vadd.f32 %v916, %v1111
  %v1113 = vpop.f32.mrb[0].mxu0
  %v1114 = vadd.f32 %v916, %v1113
  %1115 = vmatprep.mubr.f32.mxu0 0.0
  %1116 = vmatmul.mubr.f32.gmra.mrb[0].mxu0 %v992
  %v1117 = vpop.f32.mrb[0].mxu0
  %v1118 = vadd.f32 %v921, %v1117
  %v1119 = vpop.f32.mrb[0].mxu0
  %v1120 = vadd.f32 %v921, %v1119
  %1121 = vmatprep.mubr.f32.mxu0 0.0
  %1122 = vmatmul.mubr.f32.gmra.mrb[0].mxu0 %v995
  %v1123 = vpop.f32.mrb[0].mxu0
  %v1124 = vadd.f32 %v926, %v1123
  %v1125 = vpop.f32.mrb[0].mxu0
  %v1126 = vadd.f32 %v926, %v1125
  %1127 = vmatprep.mubr.f32.mxu0 0.0
  %1128 = vmatmul.mubr.f32.gmra.mrb[0].mxu0 %v998
  %v1129 = vpop.f32.mrb[0].mxu0
  %v1130 = vadd.f32 %v931, %v1129
  %v1131 = vpop.f32.mrb[0].mxu0
  %v1132 = vadd.f32 %v931, %v1131
  %1133 = vmatprep.mubr.f32.mxu0 0.0
  %1134 = vmatmul.mubr.f32.gmra.mrb[0].mxu0 %v1001
  %v1135 = vpop.f32.mrb[0].mxu0
  %v1136 = vadd.f32 %v936, %v1135
  %v1137 = vpop.f32.mrb[0].mxu0
  %v1138 = vadd.f32 %v936, %v1137
  %1139 = vmatprep.mubr.f32.mxu0 0.0
  %1140 = vmatmul.mubr.f32.gmra.mrb[0].mxu0 %v1004
  %v1141 = vpop.f32.mrb[0].mxu0
  %v1142 = vadd.f32 %v941, %v1141
  %v1143 = vpop.f32.mrb[0].mxu0
  %v1144 = vadd.f32 %v941, %v1143
  %1145 = vmatprep.mubr.f32.mxu0 0.0
  %1146 = vmatmul.mubr.f32.gmra.mrb[0].mxu0 %v1007
  %v1147 = vpop.f32.mrb[0].mxu0
  %v1148 = vadd.f32 %v946, %v1147
  %v1149 = vpop.f32.mrb[0].mxu0
  %v1150 = vadd.f32 %v946, %v1149
  %1151 = vmatprep.mubr.f32.mxu0 0.0
  %1152 = vmatmul.mubr.f32.gmra.mrb[0].mxu0 %v1010
  %v1153 = vpop.f32.mrb[0].mxu0
  %v1154 = vadd.f32 %v951, %v1153
  %v1155 = vpop.f32.mrb[0].mxu0
  %v1156 = vadd.f32 %v951, %v1155
  %1157 = vmatprep.mubr.f32.mxu0 0.0
  %1158 = vmatmul.mubr.f32.gmra.mrb[0].mxu0 %v1013
  %v1159 = vpop.f32.mrb[0].mxu0
  %v1160 = vadd.f32 %v956, %v1159
  %v1161 = vpop.f32.mrb[0].mxu0
  %v1162 = vadd.f32 %v956, %v1161
  %1163 = vmatprep.mubr.f32.mxu0 0.0
  %1164 = vmatmul.mubr.f32.gmra.mrb[0].mxu0 %v1016
  %v1165 = vpop.f32.mrb[0].mxu0
  %v1166 = vadd.f32 %v961, %v1165
  %v1167 = vpop.f32.mrb[0].mxu0
  %v1168 = vadd.f32 %v961, %v1167
  %1169 = vmatprep.mubr.f32.mxu0 0.0
  %1170 = vmatmul.mubr.f32.gmra.mrb[0].mxu0 %v1019
  %v1171 = vpop.f32.mrb[0].mxu0
  %v1172 = vadd.f32 %v966, %v1171
  %v1173 = vpop.f32.mrb[0].mxu0
  %v1174 = vadd.f32 %v966, %v1173
  %1175 = vmatprep.mubr.f32.mxu0 0.0
  %1176 = vmatmul.mubr.f32.gmra.mrb[0].mxu0 %v1022
  %v1177 = vpop.f32.mrb[0].mxu0
  %v1178 = vadd.f32 %v971, %v1177
  %v1179 = vpop.f32.mrb[0].mxu0
  %v1180 = vadd.f32 %v971, %v1179
  %1181 = vmatprep.mubr.f32.mxu0 0.0
  %1182 = vmatmul.mubr.f32.gmra.mrb[0].mxu0 %v1025
  %v1183 = vpop.f32.mrb[0].mxu0
  %v1184 = vadd.f32 %v976, %v1183
  %v1185 = vpop.f32.mrb[0].mxu0
  %v1186 = vadd.f32 %v976, %v1185
  %1187 = vdwg.mxu0
  %1188 = vmatprep.subr.mxu0 %v805
  %1189 = vmatpush1.msra.mxu0 %v804
  %1190 = vmatprep.subr.mxu0 %v813
  %1191 = vmatpush1.msra.mxu0 %v812
  %1192 = vmatprep.subr.mxu0 %v821
  %1193 = vmatpush1.msra.mxu0 %v820
  %1194 = vmatprep.subr.mxu0 %v829
  %1195 = vmatpush1.msra.mxu0 %v828
  %1196 = vmatprep.subr.mxu0 %v837
  %1197 = vmatpush1.msra.mxu0 %v836
  %1198 = vmatprep.subr.mxu0 %v845
  %1199 = vmatpush1.msra.mxu0 %v844
  %1200 = vmatprep.subr.mxu0 %v853
  %1201 = vmatpush1.msra.mxu0 %v852
  %1202 = vmatprep.subr.mxu0 %v861
  %1203 = vmatpush1.msra.mxu0 %v860
  %1204 = vmatprep.subr.mxu0 0.0
  %1205 = vmatpush1.msra.mxu0 0.0
  %1206 = vmatprep.subr.mxu0 0.0
  %1207 = vmatpush1.msra.mxu0 0.0
  %1208 = vmatprep.subr.mxu0 0.0
  %1209 = vmatpush1.msra.mxu0 0.0
  %1210 = vmatprep.subr.mxu0 0.0
  %1211 = vmatpush1.msra.mxu0 0.0
  %1212 = vmatprep.subr.mxu0 0.0
  %1213 = vmatpush1.msra.mxu0 0.0
  %1214 = vmatprep.subr.mxu0 0.0
  %1215 = vmatpush1.msra.mxu0 0.0
  %1216 = vmatprep.subr.mxu0 0.0
  %1217 = vmatpush1.msra.mxu0 0.0
  %1218 = vmatprep.subr.mxu0 0.0
  %1219 = vmatpush1.msra.mxu0 0.0
  %1220 = vmatprep.subr.mxu0 0.0
  %1221 = vmatpush1.msra.mxu0 0.0
  %1222 = vmatprep.subr.mxu0 0.0
  %1223 = vmatpush1.msra.mxu0 0.0
  %1224 = vmatprep.subr.mxu0 0.0
  %1225 = vmatpush1.msra.mxu0 0.0
  %1226 = vmatprep.subr.mxu0 0.0
  %1227 = vmatpush1.msra.mxu0 0.0
  %1228 = vmatprep.subr.mxu0 0.0
  %1229 = vmatpush1.msra.mxu0 0.0
  %1230 = vmatprep.subr.mxu0 0.0
  %1231 = vmatpush1.msra.mxu0 0.0
  %1232 = vmatprep.subr.mxu0 0.0
  %1233 = vmatpush1.msra.mxu0 0.0
  %1234 = vmatprep.subr.mxu0 0.0
  %1235 = vmatpush1.msra.mxu0 0.0
  %1236 = vmatprep.subr.mxu0 0.0
  %1237 = vmatpush1.msra.mxu0 0.0
  %1238 = vmatprep.subr.mxu0 0.0
  %1239 = vmatpush1.msra.mxu0 0.0
  %1240 = vmatprep.subr.mxu0 0.0
  %1241 = vmatpush1.msra.mxu0 0.0
  %1242 = vmatprep.subr.mxu0 0.0
  %1243 = vmatpush1.msra.mxu0 0.0
  %1244 = vmatprep.subr.mxu0 0.0
  %1245 = vmatpush1.msra.mxu0 0.0
  %1246 = vmatprep.subr.mxu0 0.0
  %1247 = vmatpush1.msra.mxu0 0.0
  %1248 = vmatprep.subr.mxu0 0.0
  %1249 = vmatpush1.msra.mxu0 0.0
  %1250 = vmatprep.subr.mxu0 0.0
  %1251 = vmatpush1.msra.mxu0 0.0
  %1252 = vmatprep.mubr.f32.mxu0 0.0
  %1253 = vmatmul.mubr.f32.gmra.mrb[0].mxu0 %v980
  %v1254 = vpop.f32.mrb[0].mxu0
  %v1255 = vadd.f32 %v901, %v1254
  %v1256 = vpop.f32.mrb[0].mxu0
  %v1257 = vadd.f32 %v901, %v1256
  %1258 = vmatprep.mubr.f32.mxu0 0.0
  %1259 = vmatmul.mubr.f32.gmra.mrb[0].mxu0 %v983
  %v1260 = vpop.f32.mrb[0].mxu0
  %v1261 = vadd.f32 %v906, %v1260
  %v1262 = vpop.f32.mrb[0].mxu0
  %v1263 = vadd.f32 %v906, %v1262
  %1264 = vmatprep.mubr.f32.mxu0 0.0
  %1265 = vmatmul.mubr.f32.gmra.mrb[0].mxu0 %v986
  %v1266 = vpop.f32.mrb[0].mxu0
  %v1267 = vadd.f32 %v911, %v1266
  %v1268 = vpop.f32.mrb[0].mxu0
  %v1269 = vadd.f32 %v911, %v1268
  %1270 = vmatprep.mubr.f32.mxu0 0.0
  %1271 = vmatmul.mubr.f32.gmra.mrb[0].mxu0 %v989
  %v1272 = vpop.f32.mrb[0].mxu0
  %v1273 = vadd.f32 %v916, %v1272
  %v1274 = vpop.f32.mrb[0].mxu0
  %v1275 = vadd.f32 %v916, %v1274
  %1276 = vmatprep.mubr.f32.mxu0 0.0
  %1277 = vmatmul.mubr.f32.gmra.mrb[0].mxu0 %v992
  %v1278 = vpop.f32.mrb[0].mxu0
  %v1279 = vadd.f32 %v921, %v1278
  %v1280 = vpop.f32.mrb[0].mxu0
  %v1281 = vadd.f32 %v921, %v1280
  %1282 = vmatprep.mubr.f32.mxu0 0.0
  %1283 = vmatmul.mubr.f32.gmra.mrb[0].mxu0 %v995
  %v1284 = vpop.f32.mrb[0].mxu0
  %v1285 = vadd.f32 %v926, %v1284
  %v1286 = vpop.f32.mrb[0].mxu0
  %v1287 = vadd.f32 %v926, %v1286
  %1288 = vmatprep.mubr.f32.mxu0 0.0
  %1289 = vmatmul.mubr.f32.gmra.mrb[0].mxu0 %v998
  %v1290 = vpop.f32.mrb[0].mxu0
  %v1291 = vadd.f32 %v931, %v1290
  %v1292 = vpop.f32.mrb[0].mxu0
  %v1293 = vadd.f32 %v931, %v1292
  %1294 = vmatprep.mubr.f32.mxu0 0.0
  %1295 = vmatmul.mubr.f32.gmra.mrb[0].mxu0 %v1001
  %v1296 = vpop.f32.mrb[0].mxu0
  %v1297 = vadd.f32 %v936, %v1296
  %v1298 = vpop.f32.mrb[0].mxu0
  %v1299 = vadd.f32 %v936, %v1298
  %1300 = vmatprep.mubr.f32.mxu0 0.0
  %1301 = vmatmul.mubr.f32.gmra.mrb[0].mxu0 %v1004
  %v1302 = vpop.f32.mrb[0].mxu0
  %v1303 = vadd.f32 %v941, %v1302
  %v1304 = vpop.f32.mrb[0].mxu0
  %v1305 = vadd.f32 %v941, %v1304
  %1306 = vmatprep.mubr.f32.mxu0 0.0
  %1307 = vmatmul.mubr.f32.gmra.mrb[0].mxu0 %v1007
  %v1308 = vpop.f32.mrb[0].mxu0
  %v1309 = vadd.f32 %v946, %v1308
  %v1310 = vpop.f32.mrb[0].mxu0
  %v1311 = vadd.f32 %v946, %v1310
  %1312 = vmatprep.mubr.f32.mxu0 0.0
  %1313 = vmatmul.mubr.f32.gmra.mrb[0].mxu0 %v1010
  %v1314 = vpop.f32.mrb[0].mxu0
  %v1315 = vadd.f32 %v951, %v1314
  %v1316 = vpop.f32.mrb[0].mxu0
  %v1317 = vadd.f32 %v951, %v1316
  %1318 = vmatprep.mubr.f32.mxu0 0.0
  %1319 = vmatmul.mubr.f32.gmra.mrb[0].mxu0 %v1013
  %v1320 = vpop.f32.mrb[0].mxu0
  %v1321 = vadd.f32 %v956, %v1320
  %v1322 = vpop.f32.mrb[0].mxu0
  %v1323 = vadd.f32 %v956, %v1322
  %1324 = vmatprep.mubr.f32.mxu0 0.0
  %1325 = vmatmul.mubr.f32.gmra.mrb[0].mxu0 %v1016
  %v1326 = vpop.f32.mrb[0].mxu0
  %v1327 = vadd.f32 %v961, %v1326
  %v1328 = vpop.f32.mrb[0].mxu0
  %v1329 = vadd.f32 %v961, %v1328
  %1330 = vmatprep.mubr.f32.mxu0 0.0
  %1331 = vmatmul.mubr.f32.gmra.mrb[0].mxu0 %v1019
  %v1332 = vpop.f32.mrb[0].mxu0
  %v1333 = vadd.f32 %v966, %v1332
  %v1334 = vpop.f32.mrb[0].mxu0
  %v1335 = vadd.f32 %v966, %v1334
  %1336 = vmatprep.mubr.f32.mxu0 0.0
  %1337 = vmatmul.mubr.f32.gmra.mrb[0].mxu0 %v1022
  %v1338 = vpop.f32.mrb[0].mxu0
  %v1339 = vadd.f32 %v971, %v1338
  %v1340 = vpop.f32.mrb[0].mxu0
  %v1341 = vadd.f32 %v971, %v1340
  %1342 = vmatprep.mubr.f32.mxu0 0.0
  %1343 = vmatmul.mubr.f32.gmra.mrb[0].mxu0 %v1025
  %v1344 = vpop.f32.mrb[0].mxu0
  %v1345 = vadd.f32 %v976, %v1344
  %v1346 = vpop.f32.mrb[0].mxu0
  %v1347 = vadd.f32 %v976, %v1346
  %1348 = vdwg.mxu0
  %1349 = vmatprep.subr.mxu0 %v807
  %1350 = vmatpush1.msra.mxu0 %v806
  %1351 = vmatprep.subr.mxu0 %v815
  %1352 = vmatpush1.msra.mxu0 %v814
  %1353 = vmatprep.subr.mxu0 %v823
  %1354 = vmatpush1.msra.mxu0 %v822
  %1355 = vmatprep.subr.mxu0 %v831
  %1356 = vmatpush1.msra.mxu0 %v830
  %1357 = vmatprep.subr.mxu0 %v839
  %1358 = vmatpush1.msra.mxu0 %v838
  %1359 = vmatprep.subr.mxu0 %v847
  %1360 = vmatpush1.msra.mxu0 %v846
  %1361 = vmatprep.subr.mxu0 %v855
  %1362 = vmatpush1.msra.mxu0 %v854
  %1363 = vmatprep.subr.mxu0 %v863
  %1364 = vmatpush1.msra.mxu0 %v862
  %1365 = vmatprep.subr.mxu0 0.0
  %1366 = vmatpush1.msra.mxu0 0.0
  %1367 = vmatprep.subr.mxu0 0.0
  %1368 = vmatpush1.msra.mxu0 0.0
  %1369 = vmatprep.subr.mxu0 0.0
  %1370 = vmatpush1.msra.mxu0 0.0
  %1371 = vmatprep.subr.mxu0 0.0
  %1372 = vmatpush1.msra.mxu0 0.0
  %1373 = vmatprep.subr.mxu0 0.0
  %1374 = vmatpush1.msra.mxu0 0.0
  %1375 = vmatprep.subr.mxu0 0.0
  %1376 = vmatpush1.msra.mxu0 0.0
  %1377 = vmatprep.subr.mxu0 0.0
  %1378 = vmatpush1.msra.mxu0 0.0
  %1379 = vmatprep.subr.mxu0 0.0
  %1380 = vmatpush1.msra.mxu0 0.0
  %1381 = vmatprep.subr.mxu0 0.0
  %1382 = vmatpush1.msra.mxu0 0.0
  %1383 = vmatprep.subr.mxu0 0.0
  %1384 = vmatpush1.msra.mxu0 0.0
  %1385 = vmatprep.subr.mxu0 0.0
  %1386 = vmatpush1.msra.mxu0 0.0
  %1387 = vmatprep.subr.mxu0 0.0
  %1388 = vmatpush1.msra.mxu0 0.0
  %1389 = vmatprep.subr.mxu0 0.0
  %1390 = vmatpush1.msra.mxu0 0.0
  %1391 = vmatprep.subr.mxu0 0.0
  %1392 = vmatpush1.msra.mxu0 0.0
  %1393 = vmatprep.subr.mxu0 0.0
  %1394 = vmatpush1.msra.mxu0 0.0
  %1395 = vmatprep.subr.mxu0 0.0
  %1396 = vmatpush1.msra.mxu0 0.0
  %1397 = vmatprep.subr.mxu0 0.0
  %1398 = vmatpush1.msra.mxu0 0.0
  %1399 = vmatprep.subr.mxu0 0.0
  %1400 = vmatpush1.msra.mxu0 0.0
  %1401 = vmatprep.subr.mxu0 0.0
  %1402 = vmatpush1.msra.mxu0 0.0
  %1403 = vmatprep.subr.mxu0 0.0
  %1404 = vmatpush1.msra.mxu0 0.0
  %1405 = vmatprep.subr.mxu0 0.0
  %1406 = vmatpush1.msra.mxu0 0.0
  %1407 = vmatprep.subr.mxu0 0.0
  %1408 = vmatpush1.msra.mxu0 0.0
  %1409 = vmatprep.subr.mxu0 0.0
  %1410 = vmatpush1.msra.mxu0 0.0
  %1411 = vmatprep.subr.mxu0 0.0
  %1412 = vmatpush1.msra.mxu0 0.0
  %1413 = vmatprep.mubr.f32.mxu0 0.0
  %1414 = vmatmul.mubr.f32.gmra.mrb[0].mxu0 %v980
  %v1415 = vpop.f32.mrb[0].mxu0
  %v1416 = vadd.f32 %v901, %v1415
  %v1417 = vpop.f32.mrb[0].mxu0
  %v1418 = vadd.f32 %v901, %v1417
  %1419 = vmatprep.mubr.f32.mxu0 0.0
  %1420 = vmatmul.mubr.f32.gmra.mrb[0].mxu0 %v983
  %v1421 = vpop.f32.mrb[0].mxu0
  %v1422 = vadd.f32 %v906, %v1421
  %v1423 = vpop.f32.mrb[0].mxu0
  %v1424 = vadd.f32 %v906, %v1423
  %1425 = vmatprep.mubr.f32.mxu0 0.0
  %1426 = vmatmul.mubr.f32.gmra.mrb[0].mxu0 %v986
  %v1427 = vpop.f32.mrb[0].mxu0
  %v1428 = vadd.f32 %v911, %v1427
  %v1429 = vpop.f32.mrb[0].mxu0
  %v1430 = vadd.f32 %v911, %v1429
  %1431 = vmatprep.mubr.f32.mxu0 0.0
  %1432 = vmatmul.mubr.f32.gmra.mrb[0].mxu0 %v989
  %v1433 = vpop.f32.mrb[0].mxu0
  %v1434 = vadd.f32 %v916, %v1433
  %v1435 = vpop.f32.mrb[0].mxu0
  %v1436 = vadd.f32 %v916, %v1435
  %1437 = vmatprep.mubr.f32.mxu0 0.0
  %1438 = vmatmul.mubr.f32.gmra.mrb[0].mxu0 %v992
  %v1439 = vpop.f32.mrb[0].mxu0
  %v1440 = vadd.f32 %v921, %v1439
  %v1441 = vpop.f32.mrb[0].mxu0
  %v1442 = vadd.f32 %v921, %v1441
  %1443 = vmatprep.mubr.f32.mxu0 0.0
  %1444 = vmatmul.mubr.f32.gmra.mrb[0].mxu0 %v995
  %v1445 = vpop.f32.mrb[0].mxu0
  %v1446 = vadd.f32 %v926, %v1445
  %v1447 = vpop.f32.mrb[0].mxu0
  %v1448 = vadd.f32 %v926, %v1447
  %1449 = vmatprep.mubr.f32.mxu0 0.0
  %1450 = vmatmul.mubr.f32.gmra.mrb[0].mxu0 %v998
  %v1451 = vpop.f32.mrb[0].mxu0
  %v1452 = vadd.f32 %v931, %v1451
  %v1453 = vpop.f32.mrb[0].mxu0
  %v1454 = vadd.f32 %v931, %v1453
  %1455 = vmatprep.mubr.f32.mxu0 0.0
  %1456 = vmatmul.mubr.f32.gmra.mrb[0].mxu0 %v1001
  %v1457 = vpop.f32.mrb[0].mxu0
  %v1458 = vadd.f32 %v936, %v1457
  %v1459 = vpop.f32.mrb[0].mxu0
  %v1460 = vadd.f32 %v936, %v1459
  %1461 = vmatprep.mubr.f32.mxu0 0.0
  %1462 = vmatmul.mubr.f32.gmra.mrb[0].mxu0 %v1004
  %v1463 = vpop.f32.mrb[0].mxu0
  %v1464 = vadd.f32 %v941, %v1463
  %v1465 = vpop.f32.mrb[0].mxu0
  %v1466 = vadd.f32 %v941, %v1465
  %1467 = vmatprep.mubr.f32.mxu0 0.0
  %1468 = vmatmul.mubr.f32.gmra.mrb[0].mxu0 %v1007
  %v1469 = vpop.f32.mrb[0].mxu0
  %v1470 = vadd.f32 %v946, %v1469
  %v1471 = vpop.f32.mrb[0].mxu0
  %v1472 = vadd.f32 %v946, %v1471
  %1473 = vmatprep.mubr.f32.mxu0 0.0
  %1474 = vmatmul.mubr.f32.gmra.mrb[0].mxu0 %v1010
  %v1475 = vpop.f32.mrb[0].mxu0
  %v1476 = vadd.f32 %v951, %v1475
  %v1477 = vpop.f32.mrb[0].mxu0
  %v1478 = vadd.f32 %v951, %v1477
  %1479 = vmatprep.mubr.f32.mxu0 0.0
  %1480 = vmatmul.mubr.f32.gmra.mrb[0].mxu0 %v1013
  %v1481 = vpop.f32.mrb[0].mxu0
  %v1482 = vadd.f32 %v956, %v1481
  %v1483 = vpop.f32.mrb[0].mxu0
  %v1484 = vadd.f32 %v956, %v1483
  %1485 = vmatprep.mubr.f32.mxu0 0.0
  %1486 = vmatmul.mubr.f32.gmra.mrb[0].mxu0 %v1016
  %v1487 = vpop.f32.mrb[0].mxu0
  %v1488 = vadd.f32 %v961, %v1487
  %v1489 = vpop.f32.mrb[0].mxu0
  %v1490 = vadd.f32 %v961, %v1489
  %1491 = vmatprep.mubr.f32.mxu0 0.0
  %1492 = vmatmul.mubr.f32.gmra.mrb[0].mxu0 %v1019
  %v1493 = vpop.f32.mrb[0].mxu0
  %v1494 = vadd.f32 %v966, %v1493
  %v1495 = vpop.f32.mrb[0].mxu0
  %v1496 = vadd.f32 %v966, %v1495
  %1497 = vmatprep.mubr.f32.mxu0 0.0
  %1498 = vmatmul.mubr.f32.gmra.mrb[0].mxu0 %v1022
  %v1499 = vpop.f32.mrb[0].mxu0
  %v1500 = vadd.f32 %v971, %v1499
  %v1501 = vpop.f32.mrb[0].mxu0
  %v1502 = vadd.f32 %v971, %v1501
  %1503 = vmatprep.mubr.f32.mxu0 0.0
  %1504 = vmatmul.mubr.f32.gmra.mrb[0].mxu0 %v1025
  %v1505 = vpop.f32.mrb[0].mxu0
  %v1506 = vadd.f32 %v976, %v1505
  %v1507 = vpop.f32.mrb[0].mxu0
  %v1508 = vadd.f32 %v976, %v1507
  %1509 = vdwg.mxu0
  %1510 = vmatprep.subr.mxu0 %v809
  %1511 = vmatpush1.msra.mxu0 %v808
  %1512 = vmatprep.subr.mxu0 %v817
  %1513 = vmatpush1.msra.mxu0 %v816
  %1514 = vmatprep.subr.mxu0 %v825
  %1515 = vmatpush1.msra.mxu0 %v824
  %1516 = vmatprep.subr.mxu0 %v833
  %1517 = vmatpush1.msra.mxu0 %v832
  %1518 = vmatprep.subr.mxu0 %v841
  %1519 = vmatpush1.msra.mxu0 %v840
  %1520 = vmatprep.subr.mxu0 %v849
  %1521 = vmatpush1.msra.mxu0 %v848
  %1522 = vmatprep.subr.mxu0 %v857
  %1523 = vmatpush1.msra.mxu0 %v856
  %1524 = vmatprep.subr.mxu0 %v865
  %1525 = vmatpush1.msra.mxu0 %v864
  %1526 = vmatprep.subr.mxu0 0.0
  %1527 = vmatpush1.msra.mxu0 0.0
  %1528 = vmatprep.subr.mxu0 0.0
  %1529 = vmatpush1.msra.mxu0 0.0
  %1530 = vmatprep.subr.mxu0 0.0
  %1531 = vmatpush1.msra.mxu0 0.0
  %1532 = vmatprep.subr.mxu0 0.0
  %1533 = vmatpush1.msra.mxu0 0.0
  %1534 = vmatprep.subr.mxu0 0.0
  %1535 = vmatpush1.msra.mxu0 0.0
  %1536 = vmatprep.subr.mxu0 0.0
  %1537 = vmatpush1.msra.mxu0 0.0
  %1538 = vmatprep.subr.mxu0 0.0
  %1539 = vmatpush1.msra.mxu0 0.0
  %1540 = vmatprep.subr.mxu0 0.0
  %1541 = vmatpush1.msra.mxu0 0.0
  %1542 = vmatprep.subr.mxu0 0.0
  %1543 = vmatpush1.msra.mxu0 0.0
  %1544 = vmatprep.subr.mxu0 0.0
  %1545 = vmatpush1.msra.mxu0 0.0
  %1546 = vmatprep.subr.mxu0 0.0
  %1547 = vmatpush1.msra.mxu0 0.0
  %1548 = vmatprep.subr.mxu0 0.0
  %1549 = vmatpush1.msra.mxu0 0.0
  %1550 = vmatprep.subr.mxu0 0.0
  %1551 = vmatpush1.msra.mxu0 0.0
  %1552 = vmatprep.subr.mxu0 0.0
  %1553 = vmatpush1.msra.mxu0 0.0
  %1554 = vmatprep.subr.mxu0 0.0
  %1555 = vmatpush1.msra.mxu0 0.0
  %1556 = vmatprep.subr.mxu0 0.0
  %1557 = vmatpush1.msra.mxu0 0.0
  %1558 = vmatprep.subr.mxu0 0.0
  %1559 = vmatpush1.msra.mxu0 0.0
  %1560 = vmatprep.subr.mxu0 0.0
  %1561 = vmatpush1.msra.mxu0 0.0
  %1562 = vmatprep.subr.mxu0 0.0
  %1563 = vmatpush1.msra.mxu0 0.0
  %1564 = vmatprep.subr.mxu0 0.0
  %1565 = vmatpush1.msra.mxu0 0.0
  %1566 = vmatprep.subr.mxu0 0.0
  %1567 = vmatpush1.msra.mxu0 0.0
  %1568 = vmatprep.subr.mxu0 0.0
  %1569 = vmatpush1.msra.mxu0 0.0
  %1570 = vmatprep.subr.mxu0 0.0
  %1571 = vmatpush1.msra.mxu0 0.0
  %1572 = vmatprep.subr.mxu0 0.0
  %1573 = vmatpush1.msra.mxu0 0.0
  %1574 = vmatprep.mubr.f32.mxu0 0.0
  %1575 = vmatmul.mubr.f32.gmra.mrb[0].mxu0 %v980
  %v1576 = vpop.f32.mrb[0].mxu0
  %v1577 = vadd.f32 %v901, %v1576
  %v1578 = vpop.f32.mrb[0].mxu0
  %v1579 = vadd.f32 %v901, %v1578
  %1580 = vmatprep.mubr.f32.mxu0 0.0
  %1581 = vmatmul.mubr.f32.gmra.mrb[0].mxu0 %v983
  %v1582 = vpop.f32.mrb[0].mxu0
  %v1583 = vadd.f32 %v906, %v1582
  %v1584 = vpop.f32.mrb[0].mxu0
  %v1585 = vadd.f32 %v906, %v1584
  %1586 = vmatprep.mubr.f32.mxu0 0.0
  %1587 = vmatmul.mubr.f32.gmra.mrb[0].mxu0 %v986
  %v1588 = vpop.f32.mrb[0].mxu0
  %v1589 = vadd.f32 %v911, %v1588
  %v1590 = vpop.f32.mrb[0].mxu0
  %v1591 = vadd.f32 %v911, %v1590
  %1592 = vmatprep.mubr.f32.mxu0 0.0
  %1593 = vmatmul.mubr.f32.gmra.mrb[0].mxu0 %v989
  %v1594 = vpop.f32.mrb[0].mxu0
  %v1595 = vadd.f32 %v916, %v1594
  %v1596 = vpop.f32.mrb[0].mxu0
  %v1597 = vadd.f32 %v916, %v1596
  %1598 = vmatprep.mubr.f32.mxu0 0.0
  %1599 = vmatmul.mubr.f32.gmra.mrb[0].mxu0 %v992
  %v1600 = vpop.f32.mrb[0].mxu0
  %v1601 = vadd.f32 %v921, %v1600
  %v1602 = vpop.f32.mrb[0].mxu0
  %v1603 = vadd.f32 %v921, %v1602
  %1604 = vmatprep.mubr.f32.mxu0 0.0
  %1605 = vmatmul.mubr.f32.gmra.mrb[0].mxu0 %v995
  %v1606 = vpop.f32.mrb[0].mxu0
  %v1607 = vadd.f32 %v926, %v1606
  %v1608 = vpop.f32.mrb[0].mxu0
  %v1609 = vadd.f32 %v926, %v1608
  %1610 = vmatprep.mubr.f32.mxu0 0.0
  %1611 = vmatmul.mubr.f32.gmra.mrb[0].mxu0 %v998
  %v1612 = vpop.f32.mrb[0].mxu0
  %v1613 = vadd.f32 %v931, %v1612
  %v1614 = vpop.f32.mrb[0].mxu0
  %v1615 = vadd.f32 %v931, %v1614
  %1616 = vmatprep.mubr.f32.mxu0 0.0
  %1617 = vmatmul.mubr.f32.gmra.mrb[0].mxu0 %v1001
  %v1618 = vpop.f32.mrb[0].mxu0
  %v1619 = vadd.f32 %v936, %v1618
  %v1620 = vpop.f32.mrb[0].mxu0
  %v1621 = vadd.f32 %v936, %v1620
  %1622 = vmatprep.mubr.f32.mxu0 0.0
  %1623 = vmatmul.mubr.f32.gmra.mrb[0].mxu0 %v1004
  %v1624 = vpop.f32.mrb[0].mxu0
  %v1625 = vadd.f32 %v941, %v1624
  %v1626 = vpop.f32.mrb[0].mxu0
  %v1627 = vadd.f32 %v941, %v1626
  %1628 = vmatprep.mubr.f32.mxu0 0.0
  %1629 = vmatmul.mubr.f32.gmra.mrb[0].mxu0 %v1007
  %v1630 = vpop.f32.mrb[0].mxu0
  %v1631 = vadd.f32 %v946, %v1630
  %v1632 = vpop.f32.mrb[0].mxu0
  %v1633 = vadd.f32 %v946, %v1632
  %1634 = vmatprep.mubr.f32.mxu0 0.0
  %1635 = vmatmul.mubr.f32.gmra.mrb[0].mxu0 %v1010
  %v1636 = vpop.f32.mrb[0].mxu0
  %v1637 = vadd.f32 %v951, %v1636
  %v1638 = vpop.f32.mrb[0].mxu0
  %v1639 = vadd.f32 %v951, %v1638
  %1640 = vmatprep.mubr.f32.mxu0 0.0
  %1641 = vmatmul.mubr.f32.gmra.mrb[0].mxu0 %v1013
  %v1642 = vpop.f32.mrb[0].mxu0
  %v1643 = vadd.f32 %v956, %v1642
  %v1644 = vpop.f32.mrb[0].mxu0
  %v1645 = vadd.f32 %v956, %v1644
  %1646 = vmatprep.mubr.f32.mxu0 0.0
  %1647 = vmatmul.mubr.f32.gmra.mrb[0].mxu0 %v1016
  %v1648 = vpop.f32.mrb[0].mxu0
  %v1649 = vadd.f32 %v961, %v1648
  %v1650 = vpop.f32.mrb[0].mxu0
  %v1651 = vadd.f32 %v961, %v1650
  %1652 = vmatprep.mubr.f32.mxu0 0.0
  %1653 = vmatmul.mubr.f32.gmra.mrb[0].mxu0 %v1019
  %v1654 = vpop.f32.mrb[0].mxu0
  %v1655 = vadd.f32 %v966, %v1654
  %v1656 = vpop.f32.mrb[0].mxu0
  %v1657 = vadd.f32 %v966, %v1656
  %1658 = vmatprep.mubr.f32.mxu0 0.0
  %1659 = vmatmul.mubr.f32.gmra.mrb[0].mxu0 %v1022
  %v1660 = vpop.f32.mrb[0].mxu0
  %v1661 = vadd.f32 %v971, %v1660
  %v1662 = vpop.f32.mrb[0].mxu0
  %v1663 = vadd.f32 %v971, %v1662
  %1664 = vmatprep.mubr.f32.mxu0 0.0
  %1665 = vmatmul.mubr.f32.gmra.mrb[0].mxu0 %v1025
  %v1666 = vpop.f32.mrb[0].mxu0
  %v1667 = vadd.f32 %v976, %v1666
  %v1668 = vpop.f32.mrb[0].mxu0
  %v1669 = vadd.f32 %v976, %v1668
  %1670 = vdwg.mxu0
  %v1671 = vmax.f32 %v1094, 0.0
  %v1672 = vmax.f32 %v1096, 0.0
  %v1673 = vmax.f32 %v1255, 0.0
  %v1674 = vmax.f32 %v1257, 0.0
  %v1675 = vmax.f32 %v1416, 0.0
  %v1676 = vmax.f32 %v1418, 0.0
  %v1677 = vmax.f32 %v1577, 0.0
  %v1678 = vmax.f32 %v1579, 0.0
  %v1679 = vmax.f32 %v1100, 0.0
  %v1680 = vmax.f32 %v1102, 0.0
  %v1681 = vmax.f32 %v1261, 0.0
  %v1682 = vmax.f32 %v1263, 0.0
  %v1683 = vmax.f32 %v1422, 0.0
  %v1684 = vmax.f32 %v1424, 0.0
  %v1685 = vmax.f32 %v1583, 0.0
  %v1686 = vmax.f32 %v1585, 0.0
  %v1687 = vmax.f32 %v1106, 0.0
  %v1688 = vmax.f32 %v1108, 0.0
  %v1689 = vmax.f32 %v1267, 0.0
  %v1690 = vmax.f32 %v1269, 0.0
  %v1691 = vmax.f32 %v1428, 0.0
  %v1692 = vmax.f32 %v1430, 0.0
  %v1693 = vmax.f32 %v1589, 0.0
  %v1694 = vmax.f32 %v1591, 0.0
  %v1695 = vmax.f32 %v1112, 0.0
  %v1696 = vmax.f32 %v1114, 0.0
  %v1697 = vmax.f32 %v1273, 0.0
  %v1698 = vmax.f32 %v1275, 0.0
  %v1699 = vmax.f32 %v1434, 0.0
  %v1700 = vmax.f32 %v1436, 0.0
  %v1701 = vmax.f32 %v1595, 0.0
  %v1702 = vmax.f32 %v1597, 0.0
  %v1703 = vmax.f32 %v1118, 0.0
  %v1704 = vmax.f32 %v1120, 0.0
  %v1705 = vmax.f32 %v1279, 0.0
  %v1706 = vmax.f32 %v1281, 0.0
  %v1707 = vmax.f32 %v1440, 0.0
  %v1708 = vmax.f32 %v1442, 0.0
  %v1709 = vmax.f32 %v1601, 0.0
  %v1710 = vmax.f32 %v1603, 0.0
  %v1711 = vmax.f32 %v1124, 0.0
  %v1712 = vmax.f32 %v1126, 0.0
  %v1713 = vmax.f32 %v1285, 0.0
  %v1714 = vmax.f32 %v1287, 0.0
  %v1715 = vmax.f32 %v1446, 0.0
  %v1716 = vmax.f32 %v1448, 0.0
  %v1717 = vmax.f32 %v1607, 0.0
  %v1718 = vmax.f32 %v1609, 0.0
  %v1719 = vmax.f32 %v1130, 0.0
  %v1720 = vmax.f32 %v1132, 0.0
  %v1721 = vmax.f32 %v1291, 0.0
  %v1722 = vmax.f32 %v1293, 0.0
  %v1723 = vmax.f32 %v1452, 0.0
  %v1724 = vmax.f32 %v1454, 0.0
  %v1725 = vmax.f32 %v1613, 0.0
  %v1726 = vmax.f32 %v1615, 0.0
  %v1727 = vmax.f32 %v1136, 0.0
  %v1728 = vmax.f32 %v1138, 0.0
  %v1729 = vmax.f32 %v1297, 0.0
  %v1730 = vmax.f32 %v1299, 0.0
  %v1731 = vmax.f32 %v1458, 0.0
  %v1732 = vmax.f32 %v1460, 0.0
  %v1733 = vmax.f32 %v1619, 0.0
  %v1734 = vmax.f32 %v1621, 0.0
  %v1735 = vmax.f32 %v1142, 0.0
  %v1736 = vmax.f32 %v1144, 0.0
  %v1737 = vmax.f32 %v1303, 0.0
  %v1738 = vmax.f32 %v1305, 0.0
  %v1739 = vmax.f32 %v1464, 0.0
  %v1740 = vmax.f32 %v1466, 0.0
  %v1741 = vmax.f32 %v1625, 0.0
  %v1742 = vmax.f32 %v1627, 0.0
  %v1743 = vmax.f32 %v1148, 0.0
  %v1744 = vmax.f32 %v1150, 0.0
  %v1745 = vmax.f32 %v1309, 0.0
  %v1746 = vmax.f32 %v1311, 0.0
  %v1747 = vmax.f32 %v1470, 0.0
  %v1748 = vmax.f32 %v1472, 0.0
  %v1749 = vmax.f32 %v1631, 0.0
  %v1750 = vmax.f32 %v1633, 0.0
  %v1751 = vmax.f32 %v1154, 0.0
  %v1752 = vmax.f32 %v1156, 0.0
  %v1753 = vmax.f32 %v1315, 0.0
  %v1754 = vmax.f32 %v1317, 0.0
  %v1755 = vmax.f32 %v1476, 0.0
  %v1756 = vmax.f32 %v1478, 0.0
  %v1757 = vmax.f32 %v1637, 0.0
  %v1758 = vmax.f32 %v1639, 0.0
  %v1759 = vmax.f32 %v1160, 0.0
  %v1760 = vmax.f32 %v1162, 0.0
  %v1761 = vmax.f32 %v1321, 0.0
  %v1762 = vmax.f32 %v1323, 0.0
  %v1763 = vmax.f32 %v1482, 0.0
  %v1764 = vmax.f32 %v1484, 0.0
  %v1765 = vmax.f32 %v1643, 0.0
  %v1766 = vmax.f32 %v1645, 0.0
  %v1767 = vmax.f32 %v1166, 0.0
  %v1768 = vmax.f32 %v1168, 0.0
  %v1769 = vmax.f32 %v1327, 0.0
  %v1770 = vmax.f32 %v1329, 0.0
  %v1771 = vmax.f32 %v1488, 0.0
  %v1772 = vmax.f32 %v1490, 0.0
  %v1773 = vmax.f32 %v1649, 0.0
  %v1774 = vmax.f32 %v1651, 0.0
  %v1775 = vmax.f32 %v1172, 0.0
  %v1776 = vmax.f32 %v1174, 0.0
  %v1777 = vmax.f32 %v1333, 0.0
  %v1778 = vmax.f32 %v1335, 0.0
  %v1779 = vmax.f32 %v1494, 0.0
  %v1780 = vmax.f32 %v1496, 0.0
  %v1781 = vmax.f32 %v1655, 0.0
  %v1782 = vmax.f32 %v1657, 0.0
  %v1783 = vmax.f32 %v1178, 0.0
  %v1784 = vmax.f32 %v1180, 0.0
  %v1785 = vmax.f32 %v1339, 0.0
  %v1786 = vmax.f32 %v1341, 0.0
  %v1787 = vmax.f32 %v1500, 0.0
  %v1788 = vmax.f32 %v1502, 0.0
  %v1789 = vmax.f32 %v1661, 0.0
  %v1790 = vmax.f32 %v1663, 0.0
  %v1791 = vmax.f32 %v1184, 0.0
  %v1792 = vmax.f32 %v1186, 0.0
  %v1793 = vmax.f32 %v1345, 0.0
  %v1794 = vmax.f32 %v1347, 0.0
  %v1795 = vmax.f32 %v1506, 0.0
  %v1796 = vmax.f32 %v1508, 0.0
  %v1797 = vmax.f32 %v1667, 0.0
  %v1798 = vmax.f32 %v1669, 0.0
  %v1799 = vld [vmem:[%s5] sm:$0xff]
  %v1800 = vld [vmem:[%s5 + $0x8] sm:$0xff]
  %v1801 = vld [vmem:[%s5 + $0x10] sm:$0xff]
  %v1802 = vld [vmem:[%s5 + $0x18] sm:$0xff]
  %v1803 = vld [vmem:[%s5 + $0x20] sm:$0xff]
  %v1804 = vld [vmem:[%s5 + $0x28] sm:$0xff]
  %v1805 = vld [vmem:[%s5 + $0x30] sm:$0xff]
  %v1806 = vld [vmem:[%s5 + $0x38] sm:$0xff]
  %v1807 = vld [vmem:[%s6] sm:$0xff]
  %v1808 = vld [vmem:[%s6 + $0x8] sm:$0xff]
  %v1809 = vld [vmem:[%s6 + $0x10] sm:$0xff]
  %v1810 = vld [vmem:[%s6 + $0x18] sm:$0xff]
  %v1811 = vld [vmem:[%s6 + $0x20] sm:$0xff]
  %v1812 = vld [vmem:[%s6 + $0x28] sm:$0xff]
  %v1813 = vld [vmem:[%s6 + $0x30] sm:$0xff]
  %v1814 = vld [vmem:[%s6 + $0x38] sm:$0xff]
  %1816 = vset.pattern.permute.xlu0 0
  %1817 = vperm.xlu0 %1816, %v1807
  %v1818 = vpop.permute.xlu0 %1817
  %1821 = vset.pattern.permute.xlu0 0
  %1822 = vperm.xlu0 %1821, %v1808
  %v1823 = vpop.permute.xlu0 %1822
  %1826 = vset.pattern.permute.xlu0 0
  %1827 = vperm.xlu0 %1826, %v1809
  %v1828 = vpop.permute.xlu0 %1827
  %1831 = vset.pattern.permute.xlu0 0
  %1832 = vperm.xlu0 %1831, %v1810
  %v1833 = vpop.permute.xlu0 %1832
  %1836 = vset.pattern.permute.xlu0 0
  %1837 = vperm.xlu0 %1836, %v1811
  %v1838 = vpop.permute.xlu0 %1837
  %1841 = vset.pattern.permute.xlu0 0
  %1842 = vperm.xlu0 %1841, %v1812
  %v1843 = vpop.permute.xlu0 %1842
  %1846 = vset.pattern.permute.xlu0 0
  %1847 = vperm.xlu0 %1846, %v1813
  %v1848 = vpop.permute.xlu0 %1847
  %1851 = vset.pattern.permute.xlu0 0
  %1852 = vperm.xlu0 %1851, %v1814
  %v1853 = vpop.permute.xlu0 %1852
  %1855 = vmatprep.subr.mxu0 %v1672
  %1856 = vmatpush1.msra.mxu0 %v1671
  %1857 = vmatprep.subr.mxu0 %v1680
  %1858 = vmatpush1.msra.mxu0 %v1679
  %1859 = vmatprep.subr.mxu0 %v1688
  %1860 = vmatpush1.msra.mxu0 %v1687
  %1861 = vmatprep.subr.mxu0 %v1696
  %1862 = vmatpush1.msra.mxu0 %v1695
  %1863 = vmatprep.subr.mxu0 %v1704
  %1864 = vmatpush1.msra.mxu0 %v1703
  %1865 = vmatprep.subr.mxu0 %v1712
  %1866 = vmatpush1.msra.mxu0 %v1711
  %1867 = vmatprep.subr.mxu0 %v1720
  %1868 = vmatpush1.msra.mxu0 %v1719
  %1869 = vmatprep.subr.mxu0 %v1728
  %1870 = vmatpush1.msra.mxu0 %v1727
  %1871 = vmatprep.subr.mxu0 %v1736
  %1872 = vmatpush1.msra.mxu0 %v1735
  %1873 = vmatprep.subr.mxu0 %v1744
  %1874 = vmatpush1.msra.mxu0 %v1743
  %1875 = vmatprep.subr.mxu0 %v1752
  %1876 = vmatpush1.msra.mxu0 %v1751
  %1877 = vmatprep.subr.mxu0 %v1760
  %1878 = vmatpush1.msra.mxu0 %v1759
  %1879 = vmatprep.subr.mxu0 %v1768
  %1880 = vmatpush1.msra.mxu0 %v1767
  %1881 = vmatprep.subr.mxu0 %v1776
  %1882 = vmatpush1.msra.mxu0 %v1775
  %1883 = vmatprep.subr.mxu0 %v1784
  %1884 = vmatpush1.msra.mxu0 %v1783
  %1885 = vmatprep.subr.mxu0 %v1792
  %1886 = vmatpush1.msra.mxu0 %v1791
  %1887 = vmatprep.subr.mxu0 0.0
  %1888 = vmatpush1.msra.mxu0 0.0
  %1889 = vmatprep.subr.mxu0 0.0
  %1890 = vmatpush1.msra.mxu0 0.0
  %1891 = vmatprep.subr.mxu0 0.0
  %1892 = vmatpush1.msra.mxu0 0.0
  %1893 = vmatprep.subr.mxu0 0.0
  %1894 = vmatpush1.msra.mxu0 0.0
  %1895 = vmatprep.subr.mxu0 0.0
  %1896 = vmatpush1.msra.mxu0 0.0
  %1897 = vmatprep.subr.mxu0 0.0
  %1898 = vmatpush1.msra.mxu0 0.0
  %1899 = vmatprep.subr.mxu0 0.0
  %1900 = vmatpush1.msra.mxu0 0.0
  %1901 = vmatprep.subr.mxu0 0.0
  %1902 = vmatpush1.msra.mxu0 0.0
  %1903 = vmatprep.subr.mxu0 0.0
  %1904 = vmatpush1.msra.mxu0 0.0
  %1905 = vmatprep.subr.mxu0 0.0
  %1906 = vmatpush1.msra.mxu0 0.0
  %1907 = vmatprep.subr.mxu0 0.0
  %1908 = vmatpush1.msra.mxu0 0.0
  %1909 = vmatprep.subr.mxu0 0.0
  %1910 = vmatpush1.msra.mxu0 0.0
  %1911 = vmatprep.subr.mxu0 0.0
  %1912 = vmatpush1.msra.mxu0 0.0
  %1913 = vmatprep.subr.mxu0 0.0
  %1914 = vmatpush1.msra.mxu0 0.0
  %1915 = vmatprep.subr.mxu0 0.0
  %1916 = vmatpush1.msra.mxu0 0.0
  %1917 = vmatprep.subr.mxu0 0.0
  %1918 = vmatpush1.msra.mxu0 0.0
  %1919 = vmatprep.mubr.f32.mxu0 0.0
  %1920 = vmatmul.mubr.f32.gmra.mrb[0].mxu0 %v1799
  %v1921 = vpop.f32.mrb[0].mxu0
  %v1922 = vadd.f32 %v1818, %v1921
  %v1923 = vpop.f32.mrb[0].mxu0
  %v1924 = vadd.f32 %v1818, %v1923
  %1925 = vmatprep.mubr.f32.mxu0 0.0
  %1926 = vmatmul.mubr.f32.gmra.mrb[0].mxu0 %v1800
  %v1927 = vpop.f32.mrb[0].mxu0
  %v1928 = vadd.f32 %v1823, %v1927
  %v1929 = vpop.f32.mrb[0].mxu0
  %v1930 = vadd.f32 %v1823, %v1929
  %1931 = vmatprep.mubr.f32.mxu0 0.0
  %1932 = vmatmul.mubr.f32.gmra.mrb[0].mxu0 %v1801
  %v1933 = vpop.f32.mrb[0].mxu0
  %v1934 = vadd.f32 %v1828, %v1933
  %v1935 = vpop.f32.mrb[0].mxu0
  %v1936 = vadd.f32 %v1828, %v1935
  %1937 = vmatprep.mubr.f32.mxu0 0.0
  %1938 = vmatmul.mubr.f32.gmra.mrb[0].mxu0 %v1802
  %v1939 = vpop.f32.mrb[0].mxu0
  %v1940 = vadd.f32 %v1833, %v1939
  %v1941 = vpop.f32.mrb[0].mxu0
  %v1942 = vadd.f32 %v1833, %v1941
  %1943 = vmatprep.mubr.f32.mxu0 0.0
  %1944 = vmatmul.mubr.f32.gmra.mrb[0].mxu0 %v1803
  %v1945 = vpop.f32.mrb[0].mxu0
  %v1946 = vadd.f32 %v1838, %v1945
  %v1947 = vpop.f32.mrb[0].mxu0
  %v1948 = vadd.f32 %v1838, %v1947
  %1949 = vmatprep.mubr.f32.mxu0 0.0
  %1950 = vmatmul.mubr.f32.gmra.mrb[0].mxu0 %v1804
  %v1951 = vpop.f32.mrb[0].mxu0
  %v1952 = vadd.f32 %v1843, %v1951
  %v1953 = vpop.f32.mrb[0].mxu0
  %v1954 = vadd.f32 %v1843, %v1953
  %1955 = vmatprep.mubr.f32.mxu0 0.0
  %1956 = vmatmul.mubr.f32.gmra.mrb[0].mxu0 %v1805
  %v1957 = vpop.f32.mrb[0].mxu0
  %v1958 = vadd.f32 %v1848, %v1957
  %v1959 = vpop.f32.mrb[0].mxu0
  %v1960 = vadd.f32 %v1848, %v1959
  %1961 = vmatprep.mubr.f32.mxu0 0.0
  %1962 = vmatmul.mubr.f32.gmra.mrb[0].mxu0 %v1806
  %v1963 = vpop.f32.mrb[0].mxu0
  %v1964 = vadd.f32 %v1853, %v1963
  %v1965 = vpop.f32.mrb[0].mxu0
  %v1966 = vadd.f32 %v1853, %v1965
  %1967 = vdwg.mxu0
  %1968 = vmatprep.subr.mxu0 %v1674
  %1969 = vmatpush1.msra.mxu0 %v1673
  %1970 = vmatprep.subr.mxu0 %v1682
  %1971 = vmatpush1.msra.mxu0 %v1681
  %1972 = vmatprep.subr.mxu0 %v1690
  %1973 = vmatpush1.msra.mxu0 %v1689
  %1974 = vmatprep.subr.mxu0 %v1698
  %1975 = vmatpush1.msra.mxu0 %v1697
  %1976 = vmatprep.subr.mxu0 %v1706
  %1977 = vmatpush1.msra.mxu0 %v1705
  %1978 = vmatprep.subr.mxu0 %v1714
  %1979 = vmatpush1.msra.mxu0 %v1713
  %1980 = vmatprep.subr.mxu0 %v1722
  %1981 = vmatpush1.msra.mxu0 %v1721
  %1982 = vmatprep.subr.mxu0 %v1730
  %1983 = vmatpush1.msra.mxu0 %v1729
  %1984 = vmatprep.subr.mxu0 %v1738
  %1985 = vmatpush1.msra.mxu0 %v1737
  %1986 = vmatprep.subr.mxu0 %v1746
  %1987 = vmatpush1.msra.mxu0 %v1745
  %1988 = vmatprep.subr.mxu0 %v1754
  %1989 = vmatpush1.msra.mxu0 %v1753
  %1990 = vmatprep.subr.mxu0 %v1762
  %1991 = vmatpush1.msra.mxu0 %v1761
  %1992 = vmatprep.subr.mxu0 %v1770
  %1993 = vmatpush1.msra.mxu0 %v1769
  %1994 = vmatprep.subr.mxu0 %v1778
  %1995 = vmatpush1.msra.mxu0 %v1777
  %1996 = vmatprep.subr.mxu0 %v1786
  %1997 = vmatpush1.msra.mxu0 %v1785
  %1998 = vmatprep.subr.mxu0 %v1794
  %1999 = vmatpush1.msra.mxu0 %v1793
  %2000 = vmatprep.subr.mxu0 0.0
  %2001 = vmatpush1.msra.mxu0 0.0
  %2002 = vmatprep.subr.mxu0 0.0
  %2003 = vmatpush1.msra.mxu0 0.0
  %2004 = vmatprep.subr.mxu0 0.0
  %2005 = vmatpush1.msra.mxu0 0.0
  %2006 = vmatprep.subr.mxu0 0.0
  %2007 = vmatpush1.msra.mxu0 0.0
  %2008 = vmatprep.subr.mxu0 0.0
  %2009 = vmatpush1.msra.mxu0 0.0
  %2010 = vmatprep.subr.mxu0 0.0
  %2011 = vmatpush1.msra.mxu0 0.0
  %2012 = vmatprep.subr.mxu0 0.0
  %2013 = vmatpush1.msra.mxu0 0.0
  %2014 = vmatprep.subr.mxu0 0.0
  %2015 = vmatpush1.msra.mxu0 0.0
  %2016 = vmatprep.subr.mxu0 0.0
  %2017 = vmatpush1.msra.mxu0 0.0
  %2018 = vmatprep.subr.mxu0 0.0
  %2019 = vmatpush1.msra.mxu0 0.0
  %2020 = vmatprep.subr.mxu0 0.0
  %2021 = vmatpush1.msra.mxu0 0.0
  %2022 = vmatprep.subr.mxu0 0.0
  %2023 = vmatpush1.msra.mxu0 0.0
  %2024 = vmatprep.subr.mxu0 0.0
  %2025 = vmatpush1.msra.mxu0 0.0
  %2026 = vmatprep.subr.mxu0 0.0
  %2027 = vmatpush1.msra.mxu0 0.0
  %2028 = vmatprep.subr.mxu0 0.0
  %2029 = vmatpush1.msra.mxu0 0.0
  %2030 = vmatprep.subr.mxu0 0.0
  %2031 = vmatpush1.msra.mxu0 0.0
  %2032 = vmatprep.mubr.f32.mxu0 0.0
  %2033 = vmatmul.mubr.f32.gmra.mrb[0].mxu0 %v1799
  %v2034 = vpop.f32.mrb[0].mxu0
  %v2035 = vadd.f32 %v1818, %v2034
  %v2036 = vpop.f32.mrb[0].mxu0
  %v2037 = vadd.f32 %v1818, %v2036
  %2038 = vmatprep.mubr.f32.mxu0 0.0
  %2039 = vmatmul.mubr.f32.gmra.mrb[0].mxu0 %v1800
  %v2040 = vpop.f32.mrb[0].mxu0
  %v2041 = vadd.f32 %v1823, %v2040
  %v2042 = vpop.f32.mrb[0].mxu0
  %v2043 = vadd.f32 %v1823, %v2042
  %2044 = vmatprep.mubr.f32.mxu0 0.0
  %2045 = vmatmul.mubr.f32.gmra.mrb[0].mxu0 %v1801
  %v2046 = vpop.f32.mrb[0].mxu0
  %v2047 = vadd.f32 %v1828, %v2046
  %v2048 = vpop.f32.mrb[0].mxu0
  %v2049 = vadd.f32 %v1828, %v2048
  %2050 = vmatprep.mubr.f32.mxu0 0.0
  %2051 = vmatmul.mubr.f32.gmra.mrb[0].mxu0 %v1802
  %v2052 = vpop.f32.mrb[0].mxu0
  %v2053 = vadd.f32 %v1833, %v2052
  %v2054 = vpop.f32.mrb[0].mxu0
  %v2055 = vadd.f32 %v1833, %v2054
  %2056 = vmatprep.mubr.f32.mxu0 0.0
  %2057 = vmatmul.mubr.f32.gmra.mrb[0].mxu0 %v1803
  %v2058 = vpop.f32.mrb[0].mxu0
  %v2059 = vadd.f32 %v1838, %v2058
  %v2060 = vpop.f32.mrb[0].mxu0
  %v2061 = vadd.f32 %v1838, %v2060
  %2062 = vmatprep.mubr.f32.mxu0 0.0
  %2063 = vmatmul.mubr.f32.gmra.mrb[0].mxu0 %v1804
  %v2064 = vpop.f32.mrb[0].mxu0
  %v2065 = vadd.f32 %v1843, %v2064
  %v2066 = vpop.f32.mrb[0].mxu0
  %v2067 = vadd.f32 %v1843, %v2066
  %2068 = vmatprep.mubr.f32.mxu0 0.0
  %2069 = vmatmul.mubr.f32.gmra.mrb[0].mxu0 %v1805
  %v2070 = vpop.f32.mrb[0].mxu0
  %v2071 = vadd.f32 %v1848, %v2070
  %v2072 = vpop.f32.mrb[0].mxu0
  %v2073 = vadd.f32 %v1848, %v2072
  %2074 = vmatprep.mubr.f32.mxu0 0.0
  %2075 = vmatmul.mubr.f32.gmra.mrb[0].mxu0 %v1806
  %v2076 = vpop.f32.mrb[0].mxu0
  %v2077 = vadd.f32 %v1853, %v2076
  %v2078 = vpop.f32.mrb[0].mxu0
  %v2079 = vadd.f32 %v1853, %v2078
  %2080 = vdwg.mxu0
  %2081 = vmatprep.subr.mxu0 %v1676
  %2082 = vmatpush1.msra.mxu0 %v1675
  %2083 = vmatprep.subr.mxu0 %v1684
  %2084 = vmatpush1.msra.mxu0 %v1683
  %2085 = vmatprep.subr.mxu0 %v1692
  %2086 = vmatpush1.msra.mxu0 %v1691
  %2087 = vmatprep.subr.mxu0 %v1700
  %2088 = vmatpush1.msra.mxu0 %v1699
  %2089 = vmatprep.subr.mxu0 %v1708
  %2090 = vmatpush1.msra.mxu0 %v1707
  %2091 = vmatprep.subr.mxu0 %v1716
  %2092 = vmatpush1.msra.mxu0 %v1715
  %2093 = vmatprep.subr.mxu0 %v1724
  %2094 = vmatpush1.msra.mxu0 %v1723
  %2095 = vmatprep.subr.mxu0 %v1732
  %2096 = vmatpush1.msra.mxu0 %v1731
  %2097 = vmatprep.subr.mxu0 %v1740
  %2098 = vmatpush1.msra.mxu0 %v1739
  %2099 = vmatprep.subr.mxu0 %v1748
  %2100 = vmatpush1.msra.mxu0 %v1747
  %2101 = vmatprep.subr.mxu0 %v1756
  %2102 = vmatpush1.msra.mxu0 %v1755
  %2103 = vmatprep.subr.mxu0 %v1764
  %2104 = vmatpush1.msra.mxu0 %v1763
  %2105 = vmatprep.subr.mxu0 %v1772
  %2106 = vmatpush1.msra.mxu0 %v1771
  %2107 = vmatprep.subr.mxu0 %v1780
  %2108 = vmatpush1.msra.mxu0 %v1779
  %2109 = vmatprep.subr.mxu0 %v1788
  %2110 = vmatpush1.msra.mxu0 %v1787
  %2111 = vmatprep.subr.mxu0 %v1796
  %2112 = vmatpush1.msra.mxu0 %v1795
  %2113 = vmatprep.subr.mxu0 0.0
  %2114 = vmatpush1.msra.mxu0 0.0
  %2115 = vmatprep.subr.mxu0 0.0
  %2116 = vmatpush1.msra.mxu0 0.0
  %2117 = vmatprep.subr.mxu0 0.0
  %2118 = vmatpush1.msra.mxu0 0.0
  %2119 = vmatprep.subr.mxu0 0.0
  %2120 = vmatpush1.msra.mxu0 0.0
  %2121 = vmatprep.subr.mxu0 0.0
  %2122 = vmatpush1.msra.mxu0 0.0
  %2123 = vmatprep.subr.mxu0 0.0
  %2124 = vmatpush1.msra.mxu0 0.0
  %2125 = vmatprep.subr.mxu0 0.0
  %2126 = vmatpush1.msra.mxu0 0.0
  %2127 = vmatprep.subr.mxu0 0.0
  %2128 = vmatpush1.msra.mxu0 0.0
  %2129 = vmatprep.subr.mxu0 0.0
  %2130 = vmatpush1.msra.mxu0 0.0
  %2131 = vmatprep.subr.mxu0 0.0
  %2132 = vmatpush1.msra.mxu0 0.0
  %2133 = vmatprep.subr.mxu0 0.0
  %2134 = vmatpush1.msra.mxu0 0.0
  %2135 = vmatprep.subr.mxu0 0.0
  %2136 = vmatpush1.msra.mxu0 0.0
  %2137 = vmatprep.subr.mxu0 0.0
  %2138 = vmatpush1.msra.mxu0 0.0
  %2139 = vmatprep.subr.mxu0 0.0
  %2140 = vmatpush1.msra.mxu0 0.0
  %2141 = vmatprep.subr.mxu0 0.0
  %2142 = vmatpush1.msra.mxu0 0.0
  %2143 = vmatprep.subr.mxu0 0.0
  %2144 = vmatpush1.msra.mxu0 0.0
  %2145 = vmatprep.mubr.f32.mxu0 0.0
  %2146 = vmatmul.mubr.f32.gmra.mrb[0].mxu0 %v1799
  %v2147 = vpop.f32.mrb[0].mxu0
  %v2148 = vadd.f32 %v1818, %v2147
  %v2149 = vpop.f32.mrb[0].mxu0
  %v2150 = vadd.f32 %v1818, %v2149
  %2151 = vmatprep.mubr.f32.mxu0 0.0
  %2152 = vmatmul.mubr.f32.gmra.mrb[0].mxu0 %v1800
  %v2153 = vpop.f32.mrb[0].mxu0
  %v2154 = vadd.f32 %v1823, %v2153
  %v2155 = vpop.f32.mrb[0].mxu0
  %v2156 = vadd.f32 %v1823, %v2155
  %2157 = vmatprep.mubr.f32.mxu0 0.0
  %2158 = vmatmul.mubr.f32.gmra.mrb[0].mxu0 %v1801
  %v2159 = vpop.f32.mrb[0].mxu0
  %v2160 = vadd.f32 %v1828, %v2159
  %v2161 = vpop.f32.mrb[0].mxu0
  %v2162 = vadd.f32 %v1828, %v2161
  %2163 = vmatprep.mubr.f32.mxu0 0.0
  %2164 = vmatmul.mubr.f32.gmra.mrb[0].mxu0 %v1802
  %v2165 = vpop.f32.mrb[0].mxu0
  %v2166 = vadd.f32 %v1833, %v2165
  %v2167 = vpop.f32.mrb[0].mxu0
  %v2168 = vadd.f32 %v1833, %v2167
  %2169 = vmatprep.mubr.f32.mxu0 0.0
  %2170 = vmatmul.mubr.f32.gmra.mrb[0].mxu0 %v1803
  %v2171 = vpop.f32.mrb[0].mxu0
  %v2172 = vadd.f32 %v1838, %v2171
  %v2173 = vpop.f32.mrb[0].mxu0
  %v2174 = vadd.f32 %v1838, %v2173
  %2175 = vmatprep.mubr.f32.mxu0 0.0
  %2176 = vmatmul.mubr.f32.gmra.mrb[0].mxu0 %v1804
  %v2177 = vpop.f32.mrb[0].mxu0
  %v2178 = vadd.f32 %v1843, %v2177
  %v2179 = vpop.f32.mrb[0].mxu0
  %v2180 = vadd.f32 %v1843, %v2179
  %2181 = vmatprep.mubr.f32.mxu0 0.0
  %2182 = vmatmul.mubr.f32.gmra.mrb[0].mxu0 %v1805
  %v2183 = vpop.f32.mrb[0].mxu0
  %v2184 = vadd.f32 %v1848, %v2183
  %v2185 = vpop.f32.mrb[0].mxu0
  %v2186 = vadd.f32 %v1848, %v2185
  %2187 = vmatprep.mubr.f32.mxu0 0.0
  %2188 = vmatmul.mubr.f32.gmra.mrb[0].mxu0 %v1806
  %v2189 = vpop.f32.mrb[0].mxu0
  %v2190 = vadd.f32 %v1853, %v2189
  %v2191 = vpop.f32.mrb[0].mxu0
  %v2192 = vadd.f32 %v1853, %v2191
  %2193 = vdwg.mxu0
  %2194 = vmatprep.subr.mxu0 %v1678
  %2195 = vmatpush1.msra.mxu0 %v1677
  %2196 = vmatprep.subr.mxu0 %v1686
  %2197 = vmatpush1.msra.mxu0 %v1685
  %2198 = vmatprep.subr.mxu0 %v1694
  %2199 = vmatpush1.msra.mxu0 %v1693
  %2200 = vmatprep.subr.mxu0 %v1702
  %2201 = vmatpush1.msra.mxu0 %v1701
  %2202 = vmatprep.subr.mxu0 %v1710
  %2203 = vmatpush1.msra.mxu0 %v1709
  %2204 = vmatprep.subr.mxu0 %v1718
  %2205 = vmatpush1.msra.mxu0 %v1717
  %2206 = vmatprep.subr.mxu0 %v1726
  %2207 = vmatpush1.msra.mxu0 %v1725
  %2208 = vmatprep.subr.mxu0 %v1734
  %2209 = vmatpush1.msra.mxu0 %v1733
  %2210 = vmatprep.subr.mxu0 %v1742
  %2211 = vmatpush1.msra.mxu0 %v1741
  %2212 = vmatprep.subr.mxu0 %v1750
  %2213 = vmatpush1.msra.mxu0 %v1749
  %2214 = vmatprep.subr.mxu0 %v1758
  %2215 = vmatpush1.msra.mxu0 %v1757
  %2216 = vmatprep.subr.mxu0 %v1766
  %2217 = vmatpush1.msra.mxu0 %v1765
  %2218 = vmatprep.subr.mxu0 %v1774
  %2219 = vmatpush1.msra.mxu0 %v1773
  %2220 = vmatprep.subr.mxu0 %v1782
  %2221 = vmatpush1.msra.mxu0 %v1781
  %2222 = vmatprep.subr.mxu0 %v1790
  %2223 = vmatpush1.msra.mxu0 %v1789
  %2224 = vmatprep.subr.mxu0 %v1798
  %2225 = vmatpush1.msra.mxu0 %v1797
  %2226 = vmatprep.subr.mxu0 0.0
  %2227 = vmatpush1.msra.mxu0 0.0
  %2228 = vmatprep.subr.mxu0 0.0
  %2229 = vmatpush1.msra.mxu0 0.0
  %2230 = vmatprep.subr.mxu0 0.0
  %2231 = vmatpush1.msra.mxu0 0.0
  %2232 = vmatprep.subr.mxu0 0.0
  %2233 = vmatpush1.msra.mxu0 0.0
  %2234 = vmatprep.subr.mxu0 0.0
  %2235 = vmatpush1.msra.mxu0 0.0
  %2236 = vmatprep.subr.mxu0 0.0
  %2237 = vmatpush1.msra.mxu0 0.0
  %2238 = vmatprep.subr.mxu0 0.0
  %2239 = vmatpush1.msra.mxu0 0.0
  %2240 = vmatprep.subr.mxu0 0.0
  %2241 = vmatpush1.msra.mxu0 0.0
  %2242 = vmatprep.subr.mxu0 0.0
  %2243 = vmatpush1.msra.mxu0 0.0
  %2244 = vmatprep.subr.mxu0 0.0
  %2245 = vmatpush1.msra.mxu0 0.0
  %2246 = vmatprep.subr.mxu0 0.0
  %2247 = vmatpush1.msra.mxu0 0.0
  %2248 = vmatprep.subr.mxu0 0.0
  %2249 = vmatpush1.msra.mxu0 0.0
  %2250 = vmatprep.subr.mxu0 0.0
  %2251 = vmatpush1.msra.mxu0 0.0
  %2252 = vmatprep.subr.mxu0 0.0
  %2253 = vmatpush1.msra.mxu0 0.0
  %2254 = vmatprep.subr.mxu0 0.0
  %2255 = vmatpush1.msra.mxu0 0.0
  %2256 = vmatprep.subr.mxu0 0.0
  %2257 = vmatpush1.msra.mxu0 0.0
  %2258 = vmatprep.mubr.f32.mxu0 0.0
  %2259 = vmatmul.mubr.f32.gmra.mrb[0].mxu0 %v1799
  %v2260 = vpop.f32.mrb[0].mxu0
  %v2261 = vadd.f32 %v1818, %v2260
  %v2262 = vpop.f32.mrb[0].mxu0
  %v2263 = vadd.f32 %v1818, %v2262
  %2264 = vmatprep.mubr.f32.mxu0 0.0
  %2265 = vmatmul.mubr.f32.gmra.mrb[0].mxu0 %v1800
  %v2266 = vpop.f32.mrb[0].mxu0
  %v2267 = vadd.f32 %v1823, %v2266
  %v2268 = vpop.f32.mrb[0].mxu0
  %v2269 = vadd.f32 %v1823, %v2268
  %2270 = vmatprep.mubr.f32.mxu0 0.0
  %2271 = vmatmul.mubr.f32.gmra.mrb[0].mxu0 %v1801
  %v2272 = vpop.f32.mrb[0].mxu0
  %v2273 = vadd.f32 %v1828, %v2272
  %v2274 = vpop.f32.mrb[0].mxu0
  %v2275 = vadd.f32 %v1828, %v2274
  %2276 = vmatprep.mubr.f32.mxu0 0.0
  %2277 = vmatmul.mubr.f32.gmra.mrb[0].mxu0 %v1802
  %v2278 = vpop.f32.mrb[0].mxu0
  %v2279 = vadd.f32 %v1833, %v2278
  %v2280 = vpop.f32.mrb[0].mxu0
  %v2281 = vadd.f32 %v1833, %v2280
  %2282 = vmatprep.mubr.f32.mxu0 0.0
  %2283 = vmatmul.mubr.f32.gmra.mrb[0].mxu0 %v1803
  %v2284 = vpop.f32.mrb[0].mxu0
  %v2285 = vadd.f32 %v1838, %v2284
  %v2286 = vpop.f32.mrb[0].mxu0
  %v2287 = vadd.f32 %v1838, %v2286
  %2288 = vmatprep.mubr.f32.mxu0 0.0
  %2289 = vmatmul.mubr.f32.gmra.mrb[0].mxu0 %v1804
  %v2290 = vpop.f32.mrb[0].mxu0
  %v2291 = vadd.f32 %v1843, %v2290
  %v2292 = vpop.f32.mrb[0].mxu0
  %v2293 = vadd.f32 %v1843, %v2292
  %2294 = vmatprep.mubr.f32.mxu0 0.0
  %2295 = vmatmul.mubr.f32.gmra.mrb[0].mxu0 %v1805
  %v2296 = vpop.f32.mrb[0].mxu0
  %v2297 = vadd.f32 %v1848, %v2296
  %v2298 = vpop.f32.mrb[0].mxu0
  %v2299 = vadd.f32 %v1848, %v2298
  %2300 = vmatprep.mubr.f32.mxu0 0.0
  %2301 = vmatmul.mubr.f32.gmra.mrb[0].mxu0 %v1806
  %v2302 = vpop.f32.mrb[0].mxu0
  %v2303 = vadd.f32 %v1853, %v2302
  %v2304 = vpop.f32.mrb[0].mxu0
  %v2305 = vadd.f32 %v1853, %v2304
  %2306 = vdwg.mxu0
  %v2307 = vmax.f32 %v1922, 0.0
  %v2308 = vmax.f32 %v1924, 0.0
  %v2309 = vmax.f32 %v2035, 0.0
  %v2310 = vmax.f32 %v2037, 0.0
  %v2311 = vmax.f32 %v2148, 0.0
  %v2312 = vmax.f32 %v2150, 0.0
  %v2313 = vmax.f32 %v2261, 0.0
  %v2314 = vmax.f32 %v2263, 0.0
  %v2315 = vmax.f32 %v1928, 0.0
  %v2316 = vmax.f32 %v1930, 0.0
  %v2317 = vmax.f32 %v2041, 0.0
  %v2318 = vmax.f32 %v2043, 0.0
  %v2319 = vmax.f32 %v2154, 0.0
  %v2320 = vmax.f32 %v2156, 0.0
  %v2321 = vmax.f32 %v2267, 0.0
  %v2322 = vmax.f32 %v2269, 0.0
  %v2323 = vmax.f32 %v1934, 0.0
  %v2324 = vmax.f32 %v1936, 0.0
  %v2325 = vmax.f32 %v2047, 0.0
  %v2326 = vmax.f32 %v2049, 0.0
  %v2327 = vmax.f32 %v2160, 0.0
  %v2328 = vmax.f32 %v2162, 0.0
  %v2329 = vmax.f32 %v2273, 0.0
  %v2330 = vmax.f32 %v2275, 0.0
  %v2331 = vmax.f32 %v1940, 0.0
  %v2332 = vmax.f32 %v1942, 0.0
  %v2333 = vmax.f32 %v2053, 0.0
  %v2334 = vmax.f32 %v2055, 0.0
  %v2335 = vmax.f32 %v2166, 0.0
  %v2336 = vmax.f32 %v2168, 0.0
  %v2337 = vmax.f32 %v2279, 0.0
  %v2338 = vmax.f32 %v2281, 0.0
  %v2339 = vmax.f32 %v1946, 0.0
  %v2340 = vmax.f32 %v1948, 0.0
  %v2341 = vmax.f32 %v2059, 0.0
  %v2342 = vmax.f32 %v2061, 0.0
  %v2343 = vmax.f32 %v2172, 0.0
  %v2344 = vmax.f32 %v2174, 0.0
  %v2345 = vmax.f32 %v2285, 0.0
  %v2346 = vmax.f32 %v2287, 0.0
  %v2347 = vmax.f32 %v1952, 0.0
  %v2348 = vmax.f32 %v1954, 0.0
  %v2349 = vmax.f32 %v2065, 0.0
  %v2350 = vmax.f32 %v2067, 0.0
  %v2351 = vmax.f32 %v2178, 0.0
  %v2352 = vmax.f32 %v2180, 0.0
  %v2353 = vmax.f32 %v2291, 0.0
  %v2354 = vmax.f32 %v2293, 0.0
  %v2355 = vmax.f32 %v1958, 0.0
  %v2356 = vmax.f32 %v1960, 0.0
  %v2357 = vmax.f32 %v2071, 0.0
  %v2358 = vmax.f32 %v2073, 0.0
  %v2359 = vmax.f32 %v2184, 0.0
  %v2360 = vmax.f32 %v2186, 0.0
  %v2361 = vmax.f32 %v2297, 0.0
  %v2362 = vmax.f32 %v2299, 0.0
  %v2363 = vmax.f32 %v1964, 0.0
  %v2364 = vmax.f32 %v1966, 0.0
  %v2365 = vmax.f32 %v2077, 0.0
  %v2366 = vmax.f32 %v2079, 0.0
  %v2367 = vmax.f32 %v2190, 0.0
  %v2368 = vmax.f32 %v2192, 0.0
  %v2369 = vmax.f32 %v2303, 0.0
  %v2370 = vmax.f32 %v2305, 0.0
  %v2371 = vld [vmem:[%s7] sm:$0x1]
  %v2372 = vld [vmem:[#allocation2] sm:$0x1]
  %2374 = vset.pattern.permute.xlu0 0
  %2375 = vperm.xlu0 %2374, %v2372
  %v2376 = vpop.permute.xlu0 %2375
  %v2378 = vlaneseq
  %v2379 = vshrl.u32 %v2378, 7
  %v2380 = vsub.s32 0, %v2379
  %v2381 = vrot.slane %v2376, %v2380
  %v2383 = vsel %vm978, %v2371, 0
  %2385 = vmatprep.subr.mxu0 %v2308
  %2386 = vmatpush1.msra.mxu0 %v2307
  %2387 = vmatprep.subr.mxu0 %v2316
  %2388 = vmatpush1.msra.mxu0 %v2315
  %2389 = vmatprep.subr.mxu0 %v2324
  %2390 = vmatpush1.msra.mxu0 %v2323
  %2391 = vmatprep.subr.mxu0 %v2332
  %2392 = vmatpush1.msra.mxu0 %v2331
  %2393 = vmatprep.subr.mxu0 %v2340
  %2394 = vmatpush1.msra.mxu0 %v2339
  %2395 = vmatprep.subr.mxu0 %v2348
  %2396 = vmatpush1.msra.mxu0 %v2347
  %2397 = vmatprep.subr.mxu0 %v2356
  %2398 = vmatpush1.msra.mxu0 %v2355
  %2399 = vmatprep.subr.mxu0 %v2364
  %2400 = vmatpush1.msra.mxu0 %v2363
  %2401 = vmatprep.subr.mxu0 0.0
  %2402 = vmatpush1.msra.mxu0 0.0
  %2403 = vmatprep.subr.mxu0 0.0
  %2404 = vmatpush1.msra.mxu0 0.0
  %2405 = vmatprep.subr.mxu0 0.0
  %2406 = vmatpush1.msra.mxu0 0.0
  %2407 = vmatprep.subr.mxu0 0.0
  %2408 = vmatpush1.msra.mxu0 0.0
  %2409 = vmatprep.subr.mxu0 0.0
  %2410 = vmatpush1.msra.mxu0 0.0
  %2411 = vmatprep.subr.mxu0 0.0
  %2412 = vmatpush1.msra.mxu0 0.0
  %2413 = vmatprep.subr.mxu0 0.0
  %2414 = vmatpush1.msra.mxu0 0.0
  %2415 = vmatprep.subr.mxu0 0.0
  %2416 = vmatpush1.msra.mxu0 0.0
  %2417 = vmatprep.subr.mxu0 0.0
  %2418 = vmatpush1.msra.mxu0 0.0
  %2419 = vmatprep.subr.mxu0 0.0
  %2420 = vmatpush1.msra.mxu0 0.0
  %2421 = vmatprep.subr.mxu0 0.0
  %2422 = vmatpush1.msra.mxu0 0.0
  %2423 = vmatprep.subr.mxu0 0.0
  %2424 = vmatpush1.msra.mxu0 0.0
  %2425 = vmatprep.subr.mxu0 0.0
  %2426 = vmatpush1.msra.mxu0 0.0
  %2427 = vmatprep.subr.mxu0 0.0
  %2428 = vmatpush1.msra.mxu0 0.0
  %2429 = vmatprep.subr.mxu0 0.0
  %2430 = vmatpush1.msra.mxu0 0.0
  %2431 = vmatprep.subr.mxu0 0.0
  %2432 = vmatpush1.msra.mxu0 0.0
  %2433 = vmatprep.subr.mxu0 0.0
  %2434 = vmatpush1.msra.mxu0 0.0
  %2435 = vmatprep.subr.mxu0 0.0
  %2436 = vmatpush1.msra.mxu0 0.0
  %2437 = vmatprep.subr.mxu0 0.0
  %2438 = vmatpush1.msra.mxu0 0.0
  %2439 = vmatprep.subr.mxu0 0.0
  %2440 = vmatpush1.msra.mxu0 0.0
  %2441 = vmatprep.subr.mxu0 0.0
  %2442 = vmatpush1.msra.mxu0 0.0
  %2443 = vmatprep.subr.mxu0 0.0
  %2444 = vmatpush1.msra.mxu0 0.0
  %2445 = vmatprep.subr.mxu0 0.0
  %2446 = vmatpush1.msra.mxu0 0.0
  %2447 = vmatprep.subr.mxu0 0.0
  %2448 = vmatpush1.msra.mxu0 0.0
  %2449 = vmatprep.mubr.f32.mxu0 0.0
  %2450 = vmatmul.mubr.f32.gmra.mrb[0].mxu0 %v2383
  %v2451 = vpop.f32.mrb[0].mxu0
  %v2452 = vadd.f32 %v2381, %v2451
  %v2453 = vpop.f32.mrb[0].mxu0
  %v2454 = vadd.f32 %v2381, %v2453
  %2455 = vdwg.mxu0
  %2456 = vmatprep.subr.mxu0 %v2310
  %2457 = vmatpush1.msra.mxu0 %v2309
  %2458 = vmatprep.subr.mxu0 %v2318
  %2459 = vmatpush1.msra.mxu0 %v2317
  %2460 = vmatprep.subr.mxu0 %v2326
  %2461 = vmatpush1.msra.mxu0 %v2325
  %2462 = vmatprep.subr.mxu0 %v2334
  %2463 = vmatpush1.msra.mxu0 %v2333
  %2464 = vmatprep.subr.mxu0 %v2342
  %2465 = vmatpush1.msra.mxu0 %v2341
  %2466 = vmatprep.subr.mxu0 %v2350
  %2467 = vmatpush1.msra.mxu0 %v2349
  %2468 = vmatprep.subr.mxu0 %v2358
  %2469 = vmatpush1.msra.mxu0 %v2357
  %2470 = vmatprep.subr.mxu0 %v2366
  %2471 = vmatpush1.msra.mxu0 %v2365
  %2472 = vmatprep.subr.mxu0 0.0
  %2473 = vmatpush1.msra.mxu0 0.0
  %2474 = vmatprep.subr.mxu0 0.0
  %2475 = vmatpush1.msra.mxu0 0.0
  %2476 = vmatprep.subr.mxu0 0.0
  %2477 = vmatpush1.msra.mxu0 0.0
  %2478 = vmatprep.subr.mxu0 0.0
  %2479 = vmatpush1.msra.mxu0 0.0
  %2480 = vmatprep.subr.mxu0 0.0
  %2481 = vmatpush1.msra.mxu0 0.0
  %2482 = vmatprep.subr.mxu0 0.0
  %2483 = vmatpush1.msra.mxu0 0.0
  %2484 = vmatprep.subr.mxu0 0.0
  %2485 = vmatpush1.msra.mxu0 0.0
  %2486 = vmatprep.subr.mxu0 0.0
  %2487 = vmatpush1.msra.mxu0 0.0
  %2488 = vmatprep.subr.mxu0 0.0
  %2489 = vmatpush1.msra.mxu0 0.0
  %2490 = vmatprep.subr.mxu0 0.0
  %2491 = vmatpush1.msra.mxu0 0.0
  %2492 = vmatprep.subr.mxu0 0.0
  %2493 = vmatpush1.msra.mxu0 0.0
  %2494 = vmatprep.subr.mxu0 0.0
  %2495 = vmatpush1.msra.mxu0 0.0
  %2496 = vmatprep.subr.mxu0 0.0
  %2497 = vmatpush1.msra.mxu0 0.0
  %2498 = vmatprep.subr.mxu0 0.0
  %2499 = vmatpush1.msra.mxu0 0.0
  %2500 = vmatprep.subr.mxu0 0.0
  %2501 = vmatpush1.msra.mxu0 0.0
  %2502 = vmatprep.subr.mxu0 0.0
  %2503 = vmatpush1.msra.mxu0 0.0
  %2504 = vmatprep.subr.mxu0 0.0
  %2505 = vmatpush1.msra.mxu0 0.0
  %2506 = vmatprep.subr.mxu0 0.0
  %2507 = vmatpush1.msra.mxu0 0.0
  %2508 = vmatprep.subr.mxu0 0.0
  %2509 = vmatpush1.msra.mxu0 0.0
  %2510 = vmatprep.subr.mxu0 0.0
  %2511 = vmatpush1.msra.mxu0 0.0
  %2512 = vmatprep.subr.mxu0 0.0
  %2513 = vmatpush1.msra.mxu0 0.0
  %2514 = vmatprep.subr.mxu0 0.0
  %2515 = vmatpush1.msra.mxu0 0.0
  %2516 = vmatprep.subr.mxu0 0.0
  %2517 = vmatpush1.msra.mxu0 0.0
  %2518 = vmatprep.subr.mxu0 0.0
  %2519 = vmatpush1.msra.mxu0 0.0
  %2520 = vmatprep.mubr.f32.mxu0 0.0
  %2521 = vmatmul.mubr.f32.gmra.mrb[0].mxu0 %v2383
  %v2522 = vpop.f32.mrb[0].mxu0
  %v2523 = vadd.f32 %v2381, %v2522
  %v2524 = vpop.f32.mrb[0].mxu0
  %v2525 = vadd.f32 %v2381, %v2524
  %2526 = vdwg.mxu0
  %2527 = vmatprep.subr.mxu0 %v2312
  %2528 = vmatpush1.msra.mxu0 %v2311
  %2529 = vmatprep.subr.mxu0 %v2320
  %2530 = vmatpush1.msra.mxu0 %v2319
  %2531 = vmatprep.subr.mxu0 %v2328
  %2532 = vmatpush1.msra.mxu0 %v2327
  %2533 = vmatprep.subr.mxu0 %v2336
  %2534 = vmatpush1.msra.mxu0 %v2335
  %2535 = vmatprep.subr.mxu0 %v2344
  %2536 = vmatpush1.msra.mxu0 %v2343
  %2537 = vmatprep.subr.mxu0 %v2352
  %2538 = vmatpush1.msra.mxu0 %v2351
  %2539 = vmatprep.subr.mxu0 %v2360
  %2540 = vmatpush1.msra.mxu0 %v2359
  %2541 = vmatprep.subr.mxu0 %v2368
  %2542 = vmatpush1.msra.mxu0 %v2367
  %2543 = vmatprep.subr.mxu0 0.0
  %2544 = vmatpush1.msra.mxu0 0.0
  %2545 = vmatprep.subr.mxu0 0.0
  %2546 = vmatpush1.msra.mxu0 0.0
  %2547 = vmatprep.subr.mxu0 0.0
  %2548 = vmatpush1.msra.mxu0 0.0
  %2549 = vmatprep.subr.mxu0 0.0
  %2550 = vmatpush1.msra.mxu0 0.0
  %2551 = vmatprep.subr.mxu0 0.0
  %2552 = vmatpush1.msra.mxu0 0.0
  %2553 = vmatprep.subr.mxu0 0.0
  %2554 = vmatpush1.msra.mxu0 0.0
  %2555 = vmatprep.subr.mxu0 0.0
  %2556 = vmatpush1.msra.mxu0 0.0
  %2557 = vmatprep.subr.mxu0 0.0
  %2558 = vmatpush1.msra.mxu0 0.0
  %2559 = vmatprep.subr.mxu0 0.0
  %2560 = vmatpush1.msra.mxu0 0.0
  %2561 = vmatprep.subr.mxu0 0.0
  %2562 = vmatpush1.msra.mxu0 0.0
  %2563 = vmatprep.subr.mxu0 0.0
  %2564 = vmatpush1.msra.mxu0 0.0
  %2565 = vmatprep.subr.mxu0 0.0
  %2566 = vmatpush1.msra.mxu0 0.0
  %2567 = vmatprep.subr.mxu0 0.0
  %2568 = vmatpush1.msra.mxu0 0.0
  %2569 = vmatprep.subr.mxu0 0.0
  %2570 = vmatpush1.msra.mxu0 0.0
  %2571 = vmatprep.subr.mxu0 0.0
  %2572 = vmatpush1.msra.mxu0 0.0
  %2573 = vmatprep.subr.mxu0 0.0
  %2574 = vmatpush1.msra.mxu0 0.0
  %2575 = vmatprep.subr.mxu0 0.0
  %2576 = vmatpush1.msra.mxu0 0.0
  %2577 = vmatprep.subr.mxu0 0.0
  %2578 = vmatpush1.msra.mxu0 0.0
  %2579 = vmatprep.subr.mxu0 0.0
  %2580 = vmatpush1.msra.mxu0 0.0
  %2581 = vmatprep.subr.mxu0 0.0
  %2582 = vmatpush1.msra.mxu0 0.0
  %2583 = vmatprep.subr.mxu0 0.0
  %2584 = vmatpush1.msra.mxu0 0.0
  %2585 = vmatprep.subr.mxu0 0.0
  %2586 = vmatpush1.msra.mxu0 0.0
  %2587 = vmatprep.subr.mxu0 0.0
  %2588 = vmatpush1.msra.mxu0 0.0
  %2589 = vmatprep.subr.mxu0 0.0
  %2590 = vmatpush1.msra.mxu0 0.0
  %2591 = vmatprep.mubr.f32.mxu0 0.0
  %2592 = vmatmul.mubr.f32.gmra.mrb[0].mxu0 %v2383
  %v2593 = vpop.f32.mrb[0].mxu0
  %v2594 = vadd.f32 %v2381, %v2593
  %v2595 = vpop.f32.mrb[0].mxu0
  %v2596 = vadd.f32 %v2381, %v2595
  %2597 = vdwg.mxu0
  %2598 = vmatprep.subr.mxu0 %v2314
  %2599 = vmatpush1.msra.mxu0 %v2313
  %2600 = vmatprep.subr.mxu0 %v2322
  %2601 = vmatpush1.msra.mxu0 %v2321
  %2602 = vmatprep.subr.mxu0 %v2330
  %2603 = vmatpush1.msra.mxu0 %v2329
  %2604 = vmatprep.subr.mxu0 %v2338
  %2605 = vmatpush1.msra.mxu0 %v2337
  %2606 = vmatprep.subr.mxu0 %v2346
  %2607 = vmatpush1.msra.mxu0 %v2345
  %2608 = vmatprep.subr.mxu0 %v2354
  %2609 = vmatpush1.msra.mxu0 %v2353
  %2610 = vmatprep.subr.mxu0 %v2362
  %2611 = vmatpush1.msra.mxu0 %v2361
  %2612 = vmatprep.subr.mxu0 %v2370
  %2613 = vmatpush1.msra.mxu0 %v2369
  %2614 = vmatprep.subr.mxu0 0.0
  %2615 = vmatpush1.msra.mxu0 0.0
  %2616 = vmatprep.subr.mxu0 0.0
  %2617 = vmatpush1.msra.mxu0 0.0
  %2618 = vmatprep.subr.mxu0 0.0
  %2619 = vmatpush1.msra.mxu0 0.0
  %2620 = vmatprep.subr.mxu0 0.0
  %2621 = vmatpush1.msra.mxu0 0.0
  %2622 = vmatprep.subr.mxu0 0.0
  %2623 = vmatpush1.msra.mxu0 0.0
  %2624 = vmatprep.subr.mxu0 0.0
  %2625 = vmatpush1.msra.mxu0 0.0
  %2626 = vmatprep.subr.mxu0 0.0
  %2627 = vmatpush1.msra.mxu0 0.0
  %2628 = vmatprep.subr.mxu0 0.0
  %2629 = vmatpush1.msra.mxu0 0.0
  %2630 = vmatprep.subr.mxu0 0.0
  %2631 = vmatpush1.msra.mxu0 0.0
  %2632 = vmatprep.subr.mxu0 0.0
  %2633 = vmatpush1.msra.mxu0 0.0
  %2634 = vmatprep.subr.mxu0 0.0
  %2635 = vmatpush1.msra.mxu0 0.0
  %2636 = vmatprep.subr.mxu0 0.0
  %2637 = vmatpush1.msra.mxu0 0.0
  %2638 = vmatprep.subr.mxu0 0.0
  %2639 = vmatpush1.msra.mxu0 0.0
  %2640 = vmatprep.subr.mxu0 0.0
  %2641 = vmatpush1.msra.mxu0 0.0
  %2642 = vmatprep.subr.mxu0 0.0
  %2643 = vmatpush1.msra.mxu0 0.0
  %2644 = vmatprep.subr.mxu0 0.0
  %2645 = vmatpush1.msra.mxu0 0.0
  %2646 = vmatprep.subr.mxu0 0.0
  %2647 = vmatpush1.msra.mxu0 0.0
  %2648 = vmatprep.subr.mxu0 0.0
  %2649 = vmatpush1.msra.mxu0 0.0
  %2650 = vmatprep.subr.mxu0 0.0
  %2651 = vmatpush1.msra.mxu0 0.0
  %2652 = vmatprep.subr.mxu0 0.0
  %2653 = vmatpush1.msra.mxu0 0.0
  %2654 = vmatprep.subr.mxu0 0.0
  %2655 = vmatpush1.msra.mxu0 0.0
  %2656 = vmatprep.subr.mxu0 0.0
  %2657 = vmatpush1.msra.mxu0 0.0
  %2658 = vmatprep.subr.mxu0 0.0
  %2659 = vmatpush1.msra.mxu0 0.0
  %2660 = vmatprep.subr.mxu0 0.0
  %2661 = vmatpush1.msra.mxu0 0.0
  %2662 = vmatprep.mubr.f32.mxu0 0.0
  %2663 = vmatmul.mubr.f32.gmra.mrb[0].mxu0 %v2383
  %v2664 = vpop.f32.mrb[0].mxu0
  %v2665 = vadd.f32 %v2381, %v2664
  %v2666 = vpop.f32.mrb[0].mxu0
  %v2667 = vadd.f32 %v2381, %v2666
  %2668 = vdwg.mxu0
  %v2677 = vcombine.low %v2452, %v2454
  %v2678 = vcombine.low %v2523, %v2525
  %v2679 = vcombine.low %v2594, %v2596
  %v2680 = vcombine.low %v2665, %v2667
  %v2682 = vunpack.c.l.s4 1966171168
  %v2683 = vunpack.c.0.s8 %v2682
  %v2684 = vlaneseq
  %v2685 = vshrl.u32 %v2684, 7
  %v2686 = vsub.s32 %v2683, %v2685
  %v2687 = vrot.slane %v2677, %v2686
  %v2689 = vunpack.c.l.s4 1966171168
  %v2690 = vunpack.c.0.s8 %v2689
  %v2691 = vlaneseq
  %v2692 = vshrl.u32 %v2691, 7
  %v2693 = vsub.s32 %v2690, %v2692
  %v2694 = vrot.slane %v2678, %v2693
  %v2696 = vunpack.c.l.s4 1966171168
  %v2697 = vunpack.c.0.s8 %v2696
  %v2698 = vlaneseq
  %v2699 = vshrl.u32 %v2698, 7
  %v2700 = vsub.s32 %v2697, %v2699
  %v2701 = vrot.slane %v2679, %v2700
  %v2703 = vunpack.c.l.s4 1966171168
  %v2704 = vunpack.c.0.s8 %v2703
  %v2705 = vlaneseq
  %v2706 = vshrl.u32 %v2705, 7
  %v2707 = vsub.s32 %v2704, %v2706
  %v2708 = vrot.slane %v2680, %v2707
  %v2709 = vcombine.low %v2687, %v2694
  %v2710 = vcombine.low %v2701, %v2708
  %v2712 = vunpack.c.l.s4 1966171168
  %v2713 = vunpack.c.0.s8 %v2712
  %v2714 = vlaneseq
  %v2715 = vshrl.u32 %v2714, 7
  %v2716 = vsub.s32 %v2713, %v2715
  %v2717 = vrot.slane %v2709, %v2716
  %v2719 = vunpack.c.l.s4 1966171168
  %v2720 = vunpack.c.0.s8 %v2719
  %v2721 = vlaneseq
  %v2722 = vshrl.u32 %v2721, 7
  %v2723 = vsub.s32 %v2720, %v2722
  %v2724 = vrot.slane %v2710, %v2723
  %v2725 = vcombine.low %v2717, %v2724
  %2727 = vst [vmem:[%s9] sm:$0xff] %v2725
  // Predicated region
  $region38: #{mlp_forward.1} parent=0 // pred_check
    _
  $region39: #{mlp_forward.1} parent=0 // pred_check_branch
    %2729 = sbr.rel (0) target = $region41
  $region40: #{mlp_forward.1} parent=0 // pred_region
    _
  $region41: #{mlp_forward.1} parent=0 // pred_fallthru
    _
  // Predicated region
  $region42: #{mlp_forward.1} parent=0 // pred_check
    _
  $region43: #{mlp_forward.1} parent=0 // pred_check_branch
    %2731 = sbr.rel (0) target = $region45
  $region44: #{mlp_forward.1} parent=0 // pred_region
    _
  $region45: #{mlp_forward.1} parent=0 // pred_fallthru
    _

</llo_original>
